<compile_context>
chip_gen: v7x
topology: tpu7x:2x2x1
jax: 0.10.0
libtpu: 0.0.40
codegen_flags: <defaults>
</compile_context>

<pallas_src>
import math
from functools import partial

import jax
import jax.numpy as jnp
from jax import lax
from jax.experimental import pallas as pl
from jax.experimental.pallas import tpu as pltpu


def _layer_norm(x, gamma, beta, eps=1e-5):
    mu = jnp.mean(x, axis=-1, keepdims=True)
    var = jnp.mean((x - mu) ** 2, axis=-1, keepdims=True)
    return (x - mu) * lax.rsqrt(var + eps) * gamma + beta


def _make_kernel(num_heads):
    """Single-program kernel: full autoregressive decode for one batch element,
    with KV caches, current input row and all weights resident in VMEM."""

    def kernel(y0_ref, w_in_ref, b_in_ref,
               wqkv_ref, bqkv_ref, wo_ref, bo_ref,
               g1_ref, be1_ref, w1_ref, b1_ref, w2_ref, b2_ref,
               g2_ref, be2_ref, wfc_ref, bfc_ref,
               out_ref,
               k_cache, v_cache, yrow_ref):
        Tm, _ = out_ref.shape                 # number of decode steps (= T-1)
        num_layers = wqkv_ref.shape[0]
        D = wo_ref.shape[1]
        H = num_heads
        hd = D // H
        scale = 1.0 / math.sqrt(hd)

        # Scratch VMEM is uninitialized: zero the caches so masked (future)
        # positions stay finite.
        k_cache[...] = jnp.zeros_like(k_cache)
        v_cache[...] = jnp.zeros_like(v_cache)
        # Seed the autoregressive input with the first frame of the sequence.
        yrow_ref[...] = y0_ref[...].astype(jnp.float32)

        # Causal-mask positions along the cached-time axis.
        pos = lax.broadcasted_iota(jnp.int32, (Tm, H), 0)
        # Head selector: S[d, h] = 1 if model-dim lane d belongs to head h.
        d_idx = lax.broadcasted_iota(jnp.int32, (D, H), 0)
        h_idx = lax.broadcasted_iota(jnp.int32, (D, H), 1)
        head_sel = jnp.where(
            (d_idx >= h_idx * hd) & (d_idx < (h_idx + 1) * hd), 1.0, 0.0
        ).astype(jnp.float32)

        @pl.loop(0, Tm)
        def _step(s):
            # ---- target_fc on the single new row ----
            y = yrow_ref[...]                                        # (1, Din)
            x = jnp.einsum('nd,ed->ne', y, w_in_ref[...],
                           preferred_element_type=jnp.float32) + b_in_ref[...]

            for l in range(num_layers):
                # ---- fused QKV projection for the new row ----
                qkv = jnp.einsum('nd,ed->ne', x, wqkv_ref[l],
                                 preferred_element_type=jnp.float32) + bqkv_ref[l]
                q = qkv[:, :D]
                k = qkv[:, D:2 * D]
                v = qkv[:, 2 * D:3 * D]

                # ---- append to this layer's KV cache ----
                k_cache[pl.ds(l * Tm + s, 1), :] = k
                v_cache[pl.ds(l * Tm + s, 1), :] = v

                # ---- causal attention: new row vs cached prefix ----
                kc = k_cache[pl.ds(l * Tm, Tm), :]                   # (Tm, D)
                vc = v_cache[pl.ds(l * Tm, Tm), :]                   # (Tm, D)
                # Per-head scores via the head-selector matmul.
                scores = jnp.einsum('td,dh->th', q * kc, head_sel,
                                    preferred_element_type=jnp.float32) * scale
                scores = jnp.where(pos <= s, scores, -1e30)
                scores = scores - jnp.max(scores, axis=0, keepdims=True)
                p = jnp.exp(scores)                                  # (Tm, H)
                denom = jnp.sum(p, axis=0, keepdims=True)            # (1, H)
                p = p * pl.reciprocal(denom, approx=True)
                # Broadcast head weights back to lanes, reduce over time.
                p_lanes = jnp.einsum('th,dh->td', p, head_sel,
                                     preferred_element_type=jnp.float32)
                ctx = jnp.sum(p_lanes * vc, axis=0, keepdims=True)   # (1, D)

                attn = jnp.einsum('nd,ed->ne', ctx, wo_ref[l],
                                  preferred_element_type=jnp.float32) + bo_ref[l]
                x = _layer_norm(x + attn, g1_ref[l], be1_ref[l])

                # ---- feed-forward ----
                h1 = jnp.maximum(
                    jnp.einsum('nd,fd->nf', x, w1_ref[l],
                               preferred_element_type=jnp.float32) + b1_ref[l],
                    0.0)
                ff = jnp.einsum('nf,df->nd', h1, w2_ref[l],
                                preferred_element_type=jnp.float32) + b2_ref[l]
                x = _layer_norm(x + ff, g2_ref[l], be2_ref[l])

            # ---- output projection on the new row only ----
            pred = jnp.einsum('nd,od->no', x, wfc_ref[...],
                              preferred_element_type=jnp.float32) + bfc_ref[...]
            out_ref[pl.ds(s, 1), :] = pred.astype(out_ref.dtype)
            # Feed the prediction back as the next step's input.
            yrow_ref[...] = pred

    return kernel


@partial(jax.jit, static_argnames=('num_heads',))
def time_series_gpt_forward(sequence, params, num_heads):
    """Autoregressive forward, teacher_forcing_prob_threshold = 0.0."""
    B, T, Din = sequence.shape
    Tm = T - 1
    D = params['w_in'].shape[0]
    Dout = params['w_fc'].shape[0]
    num_layers = params['wqkv'].shape[0]
    assert Dout == Din, "autoregressive feedback needs output_size == input_size"
    assert D % num_heads == 0

    y0 = sequence[:, :1, :].astype(jnp.float32)                    # (B, 1, Din)

    weight_args = (params['w_in'], params['b_in'],
                   params['wqkv'], params['bqkv'],
                   params['wo'], params['bo'],
                   params['g1'], params['be1'],
                   params['w1'], params['b1'],
                   params['w2'], params['b2'],
                   params['g2'], params['be2'],
                   params['w_fc'], params['b_fc'])

    def _resident(a):
        # Full-array block with a constant index map: DMA'd to VMEM once and
        # kept resident across all grid (batch) steps.
        return pl.BlockSpec(a.shape, lambda b, nd=a.ndim: (0,) * nd)

    in_specs = ([pl.BlockSpec((None, 1, Din), lambda b: (b, 0, 0))] +
                [_resident(a) for a in weight_args])
    out_specs = pl.BlockSpec((None, Tm, Dout), lambda b: (b, 0, 0))

    return pl.pallas_call(
        _make_kernel(num_heads),
        out_shape=jax.ShapeDtypeStruct((B, Tm, Dout), jnp.float32),
        grid=(B,),
        in_specs=in_specs,
        out_specs=out_specs,
        scratch_shapes=[
            pltpu.VMEM((num_layers * Tm, D), jnp.float32),   # K cache (all layers)
            pltpu.VMEM((num_layers * Tm, D), jnp.float32),   # V cache (all layers)
            pltpu.VMEM((1, Din), jnp.float32),               # current AR input row
        ],
        compiler_params=pltpu.CompilerParams(
            dimension_semantics=("parallel",)),
    )(y0, *weight_args)


def init_params(key, input_size, model_size, output_size, num_decoder, ff_size):
    """Deterministic nn.Linear-style init (uniform +-1/sqrt(fan_in)), with the
    per-layer Q/K/V projections pre-fused into a single (3D, D) weight."""
    def lin(k, out_f, in_f):
        bound = 1.0 / math.sqrt(in_f)
        kw, kb = jax.random.split(k)
        w = jax.random.uniform(kw, (out_f, in_f), jnp.float32, -bound, bound)
        b = jax.random.uniform(kb, (1, out_f), jnp.float32, -bound, bound)
        return w, b

    k_in, k_fc, k_layers = jax.random.split(key, 3)
    w_in, b_in = lin(k_in, model_size, input_size)
    w_fc, b_fc = lin(k_fc, output_size, model_size)

    def layer(k):
        ks = jax.random.split(k, 6)
        wq, bq = lin(ks[0], model_size, model_size)
        wk, bk = lin(ks[1], model_size, model_size)
        wv, bv = lin(ks[2], model_size, model_size)
        wo, bo = lin(ks[3], model_size, model_size)
        w1, b1 = lin(ks[4], ff_size, model_size)
        w2, b2 = lin(ks[5], model_size, ff_size)
        wqkv = jnp.concatenate([wq, wk, wv], axis=0)        # (3D, D)
        bqkv = jnp.concatenate([bq, bk, bv], axis=1)        # (1, 3D)
        ones = jnp.ones((1, model_size), jnp.float32)
        zeros = jnp.zeros((1, model_size), jnp.float32)
        return dict(wqkv=wqkv, bqkv=bqkv, wo=wo, bo=bo,
                    g1=ones, be1=zeros, w1=w1, b1=b1, w2=w2, b2=b2,
                    g2=ones, be2=zeros)

    layers = [layer(k) for k in jax.random.split(k_layers, num_decoder)]
    stacked = {name: jnp.stack([lyr[name] for lyr in layers])
               for name in layers[0]}
    return dict(w_in=w_in, b_in=b_in, w_fc=w_fc, b_fc=b_fc, **stacked)


if __name__ == "__main__":
    B, T = 2, 8
    INPUT_SIZE = 4           # output_size must equal input_size for the
    OUTPUT_SIZE = 4          # autoregressive feedback concat to type-check
    MODEL_SIZE = 32
    NUM_DECODER = 2
    NUM_HEADS = 4
    FF_SIZE = 4 * MODEL_SIZE

    key = jax.random.PRNGKey(0)
    k_seq, k_par = jax.random.split(key)
    sequence = jax.random.normal(k_seq, (B, T, INPUT_SIZE), jnp.float32)
    params = init_params(k_par, INPUT_SIZE, MODEL_SIZE, OUTPUT_SIZE,
                         NUM_DECODER, FF_SIZE)

    out = time_series_gpt_forward(sequence, params, num_heads=NUM_HEADS)
    out = jax.block_until_ready(out)

    assert out.shape == (B, T - 1, OUTPUT_SIZE), out.shape
    assert bool(jnp.all(jnp.isfinite(out)))
    print("KERNEL_OK")
</pallas_src>

<mosaic_0001>
module attributes {stable_mosaic.version = 11 : i64} {
  func.func @kernel(%arg0: i32, %arg1: memref<1x1x4xf32, #tpu.memory_space<vmem>>, %arg2: memref<32x4xf32, #tpu.memory_space<vmem>>, %arg3: memref<1x32xf32, #tpu.memory_space<vmem>>, %arg4: memref<2x96x32xf32, #tpu.memory_space<vmem>>, %arg5: memref<2x1x96xf32, #tpu.memory_space<vmem>>, %arg6: memref<2x32x32xf32, #tpu.memory_space<vmem>>, %arg7: memref<2x1x32xf32, #tpu.memory_space<vmem>>, %arg8: memref<2x1x32xf32, #tpu.memory_space<vmem>>, %arg9: memref<2x1x32xf32, #tpu.memory_space<vmem>>, %arg10: memref<2x128x32xf32, #tpu.memory_space<vmem>>, %arg11: memref<2x1x128xf32, #tpu.memory_space<vmem>>, %arg12: memref<2x32x128xf32, #tpu.memory_space<vmem>>, %arg13: memref<2x1x32xf32, #tpu.memory_space<vmem>>, %arg14: memref<2x1x32xf32, #tpu.memory_space<vmem>>, %arg15: memref<2x1x32xf32, #tpu.memory_space<vmem>>, %arg16: memref<4x32xf32, #tpu.memory_space<vmem>>, %arg17: memref<1x4xf32, #tpu.memory_space<vmem>>, %arg18: memref<1x7x4xf32, #tpu.memory_space<vmem>>, %arg19: memref<14x32xf32, #tpu.memory_space<vmem>>, %arg20: memref<14x32xf32, #tpu.memory_space<vmem>>, %arg21: memref<1x4xf32, #tpu.memory_space<vmem>>) attributes {dimension_semantics = [#tpu.dimension_semantics<parallel>], iteration_bounds = array<i64: 2>, scalar_prefetch = 0 : i64, scratch_operands = 3 : i64, tpu.core_type = #tpu.core_type<tc>, window_params = [{transform_indices = @transform_0, window_bounds = array<i64: 1, 1, 4>}, {pipeline_mode = #tpu.pipeline_mode<synchronous>, transform_indices = @transform_1, window_bounds = array<i64: 32, 4>}, {pipeline_mode = #tpu.pipeline_mode<synchronous>, transform_indices = @transform_2, window_bounds = array<i64: 1, 32>}, {pipeline_mode = #tpu.pipeline_mode<synchronous>, transform_indices = @transform_3, window_bounds = array<i64: 2, 96, 32>}, {pipeline_mode = #tpu.pipeline_mode<synchronous>, transform_indices = @transform_4, window_bounds = array<i64: 2, 1, 96>}, {pipeline_mode = #tpu.pipeline_mode<synchronous>, transform_indices = @transform_5, window_bounds = array<i64: 2, 32, 32>}, {pipeline_mode = #tpu.pipeline_mode<synchronous>, transform_indices = @transform_6, window_bounds = array<i64: 2, 1, 32>}, {pipeline_mode = #tpu.pipeline_mode<synchronous>, transform_indices = @transform_7, window_bounds = array<i64: 2, 1, 32>}, {pipeline_mode = #tpu.pipeline_mode<synchronous>, transform_indices = @transform_8, window_bounds = array<i64: 2, 1, 32>}, {pipeline_mode = #tpu.pipeline_mode<synchronous>, transform_indices = @transform_9, window_bounds = array<i64: 2, 128, 32>}, {pipeline_mode = #tpu.pipeline_mode<synchronous>, transform_indices = @transform_10, window_bounds = array<i64: 2, 1, 128>}, {pipeline_mode = #tpu.pipeline_mode<synchronous>, transform_indices = @transform_11, window_bounds = array<i64: 2, 32, 128>}, {pipeline_mode = #tpu.pipeline_mode<synchronous>, transform_indices = @transform_12, window_bounds = array<i64: 2, 1, 32>}, {pipeline_mode = #tpu.pipeline_mode<synchronous>, transform_indices = @transform_13, window_bounds = array<i64: 2, 1, 32>}, {pipeline_mode = #tpu.pipeline_mode<synchronous>, transform_indices = @transform_14, window_bounds = array<i64: 2, 1, 32>}, {pipeline_mode = #tpu.pipeline_mode<synchronous>, transform_indices = @transform_15, window_bounds = array<i64: 4, 32>}, {pipeline_mode = #tpu.pipeline_mode<synchronous>, transform_indices = @transform_16, window_bounds = array<i64: 1, 4>}, {transform_indices = @transform_17, window_bounds = array<i64: 1, 7, 4>}]} {
    %cst = arith.constant 0.000000e+00 : f32
    %0 = vector.broadcast %cst : f32 to vector<14x32xf32>
    %c0 = arith.constant 0 : index
    %c0_0 = arith.constant 0 : index
    %1 = vector.load %arg19[%c0, %c0_0] : memref<14x32xf32, #tpu.memory_space<vmem>>, vector<14x32xf32>
    tpu.vector_store %arg19[%c0, %c0_0], %0 {strides = array<i32>} : memref<14x32xf32, #tpu.memory_space<vmem>>, vector<14x32xf32>,
    %cst_1 = arith.constant 0.000000e+00 : f32
    %2 = vector.broadcast %cst_1 : f32 to vector<14x32xf32>
    %c0_2 = arith.constant 0 : index
    %c0_3 = arith.constant 0 : index
    %3 = vector.load %arg20[%c0_2, %c0_3] : memref<14x32xf32, #tpu.memory_space<vmem>>, vector<14x32xf32>
    tpu.vector_store %arg20[%c0_2, %c0_3], %2 {strides = array<i32>} : memref<14x32xf32, #tpu.memory_space<vmem>>, vector<14x32xf32>,
    %c0_4 = arith.constant 0 : index
    %c0_5 = arith.constant 0 : index
    %c0_6 = arith.constant 0 : index
    %4 = vector.load %arg1[%c0_4, %c0_5, %c0_6] : memref<1x1x4xf32, #tpu.memory_space<vmem>>, vector<1x1x4xf32>
    %5 = vector.shape_cast %4 : vector<1x1x4xf32> to vector<1x4xf32>
    %c0_7 = arith.constant 0 : index
    %c0_8 = arith.constant 0 : index
    %6 = vector.load %arg21[%c0_7, %c0_8] : memref<1x4xf32, #tpu.memory_space<vmem>>, vector<1x4xf32>
    tpu.vector_store %arg21[%c0_7, %c0_8], %5 {strides = array<i32>} : memref<1x4xf32, #tpu.memory_space<vmem>>, vector<1x4xf32>,
    %7 = tpu.iota {dimensions = array<i32: 0>} : vector<7x4xi32>
    %8 = tpu.iota {dimensions = array<i32: 0>} : vector<32x4xi32>
    %9 = tpu.iota {dimensions = array<i32: 1>} : vector<32x4xi32>
    %c8_i32 = arith.constant 8 : i32
    %10 = vector.broadcast %c8_i32 : i32 to vector<32x4xi32>
    %11 = arith.muli %9, %10 : vector<32x4xi32>
    %12 = arith.cmpi sge, %8, %11 : vector<32x4xi32>
    %c1_i32 = arith.constant 1 : i32
    %13 = vector.broadcast %c1_i32 : i32 to vector<32x4xi32>
    %14 = arith.addi %9, %13 : vector<32x4xi32>
    %c8_i32_9 = arith.constant 8 : i32
    %15 = vector.broadcast %c8_i32_9 : i32 to vector<32x4xi32>
    %16 = arith.muli %14, %15 : vector<32x4xi32>
    %17 = arith.cmpi slt, %8, %16 : vector<32x4xi32>
    %18 = arith.andi %12, %17 : vector<32x4xi1>
    %cst_10 = arith.constant 1.000000e+00 : f32
    %cst_11 = arith.constant 0.000000e+00 : f32
    %19 = vector.broadcast %cst_10 : f32 to vector<32x4xf32>
    %20 = vector.broadcast %cst_11 : f32 to vector<32x4xf32>
    %21 = arith.select %18, %19, %20 : vector<32x4xi1>, vector<32x4xf32>
    %c0_i32 = arith.constant 0 : i32
    %c7_i32 = arith.constant 7 : i32
    %22 = arith.addi %c0_i32, %c7_i32 : i32
    %c1_i32_12 = arith.constant 1 : i32
    scf.for %arg22 = %c0_i32 to %22 step %c1_i32_12  : i32 {
      %c1_i32_14 = arith.constant 1 : i32
      %23 = arith.muli %arg22, %c1_i32_14 : i32
      %c0_i32_15 = arith.constant 0 : i32
      %24 = arith.addi %c0_i32_15, %23 : i32
      %c0_16 = arith.constant 0 : index
      %c0_17 = arith.constant 0 : index
      %25 = vector.load %arg21[%c0_16, %c0_17] : memref<1x4xf32, #tpu.memory_space<vmem>>, vector<1x4xf32>
      %c0_18 = arith.constant 0 : index
      %c0_19 = arith.constant 0 : index
      %26 = vector.load %arg2[%c0_18, %c0_19] : memref<32x4xf32, #tpu.memory_space<vmem>>, vector<32x4xf32>
      "tpu.trace_start"() <{level = 10 : i32, message = "nd,ed->ne"}> : () -> ()
      %cst_20 = arith.constant dense<0.000000e+00> : vector<1x32xf32>
      %27 = tpu.matmul %25, %26, %cst_20 {dimension_numbers = #tpu.dot_dimension_numbers<[1], [1], [0], [0], [0, 0, 1, 0], [], []>} : vector<1x4xf32>, vector<32x4xf32>, vector<1x32xf32> -> vector<1x32xf32>
      "tpu.trace_stop"() : () -> ()
      %c0_21 = arith.constant 0 : index
      %c0_22 = arith.constant 0 : index
      %28 = vector.load %arg3[%c0_21, %c0_22] : memref<1x32xf32, #tpu.memory_space<vmem>>, vector<1x32xf32>
      %29 = arith.addf %27, %28 : vector<1x32xf32>
      %c0_23 = arith.constant 0 : index
      %c0_24 = arith.constant 0 : index
      %c0_25 = arith.constant 0 : index
      %30 = vector.load %arg4[%c0_23, %c0_24, %c0_25] : memref<2x96x32xf32, #tpu.memory_space<vmem>>, vector<1x96x32xf32>
      %31 = vector.shape_cast %30 : vector<1x96x32xf32> to vector<96x32xf32>
      "tpu.trace_start"() <{level = 10 : i32, message = "nd,ed->ne"}> : () -> ()
      %cst_26 = arith.constant dense<0.000000e+00> : vector<1x96xf32>
      %32 = tpu.matmul %29, %31, %cst_26 {dimension_numbers = #tpu.dot_dimension_numbers<[1], [1], [0], [0], [0, 0, 1, 0], [], []>} : vector<1x32xf32>, vector<96x32xf32>, vector<1x96xf32> -> vector<1x96xf32>
      "tpu.trace_stop"() : () -> ()
      %c0_27 = arith.constant 0 : index
      %c0_28 = arith.constant 0 : index
      %c0_29 = arith.constant 0 : index
      %33 = vector.load %arg5[%c0_27, %c0_28, %c0_29] : memref<2x1x96xf32, #tpu.memory_space<vmem>>, vector<1x1x96xf32>
      %34 = vector.shape_cast %33 : vector<1x1x96xf32> to vector<1x96xf32>
      %35 = arith.addf %32, %34 : vector<1x96xf32>
      %36 = vector.extract_strided_slice %35 {offsets = [0, 0], sizes = [1, 32], strides = [1, 1]} : vector<1x96xf32> to vector<1x32xf32>
      %37 = vector.extract_strided_slice %35 {offsets = [0, 32], sizes = [1, 32], strides = [1, 1]} : vector<1x96xf32> to vector<1x32xf32>
      %38 = vector.extract_strided_slice %35 {offsets = [0, 64], sizes = [1, 32], strides = [1, 1]} : vector<1x96xf32> to vector<1x32xf32>
      %c0_i32_30 = arith.constant 0 : i32
      %39 = arith.addi %c0_i32_30, %24 : i32
      %40 = arith.index_cast %39 : i32 to index
      %c0_31 = arith.constant 0 : index
      %41 = vector.load %arg19[%40, %c0_31] : memref<14x32xf32, #tpu.memory_space<vmem>>, vector<1x32xf32>
      tpu.vector_store %arg19[%40, %c0_31], %37 {strides = array<i32>} : memref<14x32xf32, #tpu.memory_space<vmem>>, vector<1x32xf32>,
      %c0_i32_32 = arith.constant 0 : i32
      %42 = arith.addi %c0_i32_32, %24 : i32
      %43 = arith.index_cast %42 : i32 to index
      %c0_33 = arith.constant 0 : index
      %44 = vector.load %arg20[%43, %c0_33] : memref<14x32xf32, #tpu.memory_space<vmem>>, vector<1x32xf32>
      tpu.vector_store %arg20[%43, %c0_33], %38 {strides = array<i32>} : memref<14x32xf32, #tpu.memory_space<vmem>>, vector<1x32xf32>,
      %c0_34 = arith.constant 0 : index
      %c0_35 = arith.constant 0 : index
      %45 = vector.load %arg19[%c0_34, %c0_35] : memref<14x32xf32, #tpu.memory_space<vmem>>, vector<7x32xf32>
      %c0_36 = arith.constant 0 : index
      %c0_37 = arith.constant 0 : index
      %46 = vector.load %arg20[%c0_36, %c0_37] : memref<14x32xf32, #tpu.memory_space<vmem>>, vector<7x32xf32>
      %47 = vector.broadcast %36 : vector<1x32xf32> to vector<7x32xf32>
      %48 = arith.mulf %47, %45 : vector<7x32xf32>
      "tpu.trace_start"() <{level = 10 : i32, message = "td,dh->th"}> : () -> ()
      %cst_38 = arith.constant dense<0.000000e+00> : vector<7x4xf32>
      %49 = tpu.matmul %48, %21, %cst_38 {dimension_numbers = #tpu.dot_dimension_numbers<[1], [0], [0], [1], [0, 0, 1, 1], [], []>} : vector<7x32xf32>, vector<32x4xf32>, vector<7x4xf32> -> vector<7x4xf32>
      "tpu.trace_stop"() : () -> ()
      %cst_39 = arith.constant 0.353553385 : f32
      %50 = vector.broadcast %cst_39 : f32 to vector<7x4xf32>
      %51 = arith.mulf %49, %50 : vector<7x4xf32>
      %52 = vector.broadcast %24 : i32 to vector<7x4xi32>
      %53 = arith.cmpi sle, %7, %52 : vector<7x4xi32>
      %cst_40 = arith.constant -1.000000e+30 : f32
      %54 = vector.broadcast %cst_40 : f32 to vector<7x4xf32>
      %55 = arith.select %53, %51, %54 : vector<7x4xi1>, vector<7x4xf32>
      %cst_41 = arith.constant dense<0xFF800000> : vector<4xf32>
      %56 = vector.multi_reduction <maximumf>, %55, %cst_41 [0] : vector<7x4xf32> to vector<4xf32>
      %57 = vector.shape_cast %56 : vector<4xf32> to vector<1x4xf32>
      %58 = vector.broadcast %57 : vector<1x4xf32> to vector<7x4xf32>
      %59 = arith.subf %55, %58 : vector<7x4xf32>
      %60 = math.exp %59 : vector<7x4xf32>
      %cst_42 = arith.constant dense<0.000000e+00> : vector<4xf32>
      %61 = vector.multi_reduction <add>, %60, %cst_42 [0] : vector<7x4xf32> to vector<4xf32>
      %62 = vector.shape_cast %61 : vector<4xf32> to vector<1x4xf32>
      %63 = tpu.reciprocal %62 {approx = true} : vector<1x4xf32> -> vector<1x4xf32>
      %64 = vector.broadcast %63 : vector<1x4xf32> to vector<7x4xf32>
      %65 = arith.mulf %60, %64 : vector<7x4xf32>
      "tpu.trace_start"() <{level = 10 : i32, message = "th,dh->td"}> : () -> ()
      %cst_43 = arith.constant dense<0.000000e+00> : vector<7x32xf32>
      %66 = tpu.matmul %65, %21, %cst_43 {dimension_numbers = #tpu.dot_dimension_numbers<[1], [1], [0], [0], [0, 0, 1, 0], [], []>} : vector<7x4xf32>, vector<32x4xf32>, vector<7x32xf32> -> vector<7x32xf32>
      "tpu.trace_stop"() : () -> ()
      %67 = arith.mulf %66, %46 : vector<7x32xf32>
      %cst_44 = arith.constant dense<0.000000e+00> : vector<32xf32>
      %68 = vector.multi_reduction <add>, %67, %cst_44 [0] : vector<7x32xf32> to vector<32xf32>
      %69 = vector.shape_cast %68 : vector<32xf32> to vector<1x32xf32>
      %c0_45 = arith.constant 0 : index
      %c0_46 = arith.constant 0 : index
      %c0_47 = arith.constant 0 : index
      %70 = vector.load %arg6[%c0_45, %c0_46, %c0_47] : memref<2x32x32xf32, #tpu.memory_space<vmem>>, vector<1x32x32xf32>
      %71 = vector.shape_cast %70 : vector<1x32x32xf32> to vector<32x32xf32>
      "tpu.trace_start"() <{level = 10 : i32, message = "nd,ed->ne"}> : () -> ()
      %cst_48 = arith.constant dense<0.000000e+00> : vector<1x32xf32>
      %72 = tpu.matmul %69, %71, %cst_48 {dimension_numbers = #tpu.dot_dimension_numbers<[1], [1], [0], [0], [0, 0, 1, 0], [], []>} : vector<1x32xf32>, vector<32x32xf32>, vector<1x32xf32> -> vector<1x32xf32>
      "tpu.trace_stop"() : () -> ()
      %c0_49 = arith.constant 0 : index
      %c0_50 = arith.constant 0 : index
      %c0_51 = arith.constant 0 : index
      %73 = vector.load %arg7[%c0_49, %c0_50, %c0_51] : memref<2x1x32xf32, #tpu.memory_space<vmem>>, vector<1x1x32xf32>
      %74 = vector.shape_cast %73 : vector<1x1x32xf32> to vector<1x32xf32>
      %75 = arith.addf %72, %74 : vector<1x32xf32>
      %76 = arith.addf %29, %75 : vector<1x32xf32>
      %c0_52 = arith.constant 0 : index
      %c0_53 = arith.constant 0 : index
      %c0_54 = arith.constant 0 : index
      %77 = vector.load %arg8[%c0_52, %c0_53, %c0_54] : memref<2x1x32xf32, #tpu.memory_space<vmem>>, vector<1x1x32xf32>
      %78 = vector.shape_cast %77 : vector<1x1x32xf32> to vector<1x32xf32>
      %c0_55 = arith.constant 0 : index
      %c0_56 = arith.constant 0 : index
      %c0_57 = arith.constant 0 : index
      %79 = vector.load %arg9[%c0_55, %c0_56, %c0_57] : memref<2x1x32xf32, #tpu.memory_space<vmem>>, vector<1x1x32xf32>
      %80 = vector.shape_cast %79 : vector<1x1x32xf32> to vector<1x32xf32>
      %cst_58 = arith.constant dense<0.000000e+00> : vector<1xf32>
      %81 = vector.multi_reduction <add>, %76, %cst_58 [1] : vector<1x32xf32> to vector<1xf32>
      %82 = vector.shape_cast %81 : vector<1xf32> to vector<1x1xf32>
      %cst_59 = arith.constant 3.200000e+01 : f32
      %83 = vector.broadcast %cst_59 : f32 to vector<1x1xf32>
      %84 = arith.divf %82, %83 : vector<1x1xf32>
      %85 = vector.broadcast %84 : vector<1x1xf32> to vector<1x32xf32>
      %86 = arith.subf %76, %85 : vector<1x32xf32>
      %87 = arith.mulf %86, %86 : vector<1x32xf32>
      %cst_60 = arith.constant dense<0.000000e+00> : vector<1xf32>
      %88 = vector.multi_reduction <add>, %87, %cst_60 [1] : vector<1x32xf32> to vector<1xf32>
      %89 = vector.shape_cast %88 : vector<1xf32> to vector<1x1xf32>
      %cst_61 = arith.constant 3.200000e+01 : f32
      %90 = vector.broadcast %cst_61 : f32 to vector<1x1xf32>
      %91 = arith.divf %89, %90 : vector<1x1xf32>
      %92 = vector.broadcast %84 : vector<1x1xf32> to vector<1x32xf32>
      %93 = arith.subf %76, %92 : vector<1x32xf32>
      %cst_62 = arith.constant 9.99999974E-6 : f32
      %94 = vector.broadcast %cst_62 : f32 to vector<1x1xf32>
      %95 = arith.addf %91, %94 : vector<1x1xf32>
      %96 = math.rsqrt %95 : vector<1x1xf32>
      %97 = vector.broadcast %96 : vector<1x1xf32> to vector<1x32xf32>
      %98 = arith.mulf %93, %97 : vector<1x32xf32>
      %99 = arith.mulf %98, %78 : vector<1x32xf32>
      %100 = arith.addf %99, %80 : vector<1x32xf32>
      %c0_63 = arith.constant 0 : index
      %c0_64 = arith.constant 0 : index
      %c0_65 = arith.constant 0 : index
      %101 = vector.load %arg10[%c0_63, %c0_64, %c0_65] : memref<2x128x32xf32, #tpu.memory_space<vmem>>, vector<1x128x32xf32>
      %102 = vector.shape_cast %101 : vector<1x128x32xf32> to vector<128x32xf32>
      "tpu.trace_start"() <{level = 10 : i32, message = "nd,fd->nf"}> : () -> ()
      %cst_66 = arith.constant dense<0.000000e+00> : vector<1x128xf32>
      %103 = tpu.matmul %100, %102, %cst_66 {dimension_numbers = #tpu.dot_dimension_numbers<[1], [1], [0], [0], [0, 0, 1, 0], [], []>} : vector<1x32xf32>, vector<128x32xf32>, vector<1x128xf32> -> vector<1x128xf32>
      "tpu.trace_stop"() : () -> ()
      %c0_67 = arith.constant 0 : index
      %c0_68 = arith.constant 0 : index
      %c0_69 = arith.constant 0 : index
      %104 = vector.load %arg11[%c0_67, %c0_68, %c0_69] : memref<2x1x128xf32, #tpu.memory_space<vmem>>, vector<1x1x128xf32>
      %105 = vector.shape_cast %104 : vector<1x1x128xf32> to vector<1x128xf32>
      %106 = arith.addf %103, %105 : vector<1x128xf32>
      %cst_70 = arith.constant 0.000000e+00 : f32
      %107 = vector.broadcast %cst_70 : f32 to vector<1x128xf32>
      %108 = arith.maximumf %106, %107 : vector<1x128xf32>
      %c0_71 = arith.constant 0 : index
      %c0_72 = arith.constant 0 : index
      %c0_73 = arith.constant 0 : index
      %109 = vector.load %arg12[%c0_71, %c0_72, %c0_73] : memref<2x32x128xf32, #tpu.memory_space<vmem>>, vector<1x32x128xf32>
      %110 = vector.shape_cast %109 : vector<1x32x128xf32> to vector<32x128xf32>
      "tpu.trace_start"() <{level = 10 : i32, message = "nf,df->nd"}> : () -> ()
      %cst_74 = arith.constant dense<0.000000e+00> : vector<1x32xf32>
      %111 = tpu.matmul %108, %110, %cst_74 {dimension_numbers = #tpu.dot_dimension_numbers<[1], [1], [0], [0], [0, 0, 1, 0], [], []>} : vector<1x128xf32>, vector<32x128xf32>, vector<1x32xf32> -> vector<1x32xf32>
      "tpu.trace_stop"() : () -> ()
      %c0_75 = arith.constant 0 : index
      %c0_76 = arith.constant 0 : index
      %c0_77 = arith.constant 0 : index
      %112 = vector.load %arg13[%c0_75, %c0_76, %c0_77] : memref<2x1x32xf32, #tpu.memory_space<vmem>>, vector<1x1x32xf32>
      %113 = vector.shape_cast %112 : vector<1x1x32xf32> to vector<1x32xf32>
      %114 = arith.addf %111, %113 : vector<1x32xf32>
      %115 = arith.addf %100, %114 : vector<1x32xf32>
      %c0_78 = arith.constant 0 : index
      %c0_79 = arith.constant 0 : index
      %c0_80 = arith.constant 0 : index
      %116 = vector.load %arg14[%c0_78, %c0_79, %c0_80] : memref<2x1x32xf32, #tpu.memory_space<vmem>>, vector<1x1x32xf32>
      %117 = vector.shape_cast %116 : vector<1x1x32xf32> to vector<1x32xf32>
      %c0_81 = arith.constant 0 : index
      %c0_82 = arith.constant 0 : index
      %c0_83 = arith.constant 0 : index
      %118 = vector.load %arg15[%c0_81, %c0_82, %c0_83] : memref<2x1x32xf32, #tpu.memory_space<vmem>>, vector<1x1x32xf32>
      %119 = vector.shape_cast %118 : vector<1x1x32xf32> to vector<1x32xf32>
      %cst_84 = arith.constant dense<0.000000e+00> : vector<1xf32>
      %120 = vector.multi_reduction <add>, %115, %cst_84 [1] : vector<1x32xf32> to vector<1xf32>
      %121 = vector.shape_cast %120 : vector<1xf32> to vector<1x1xf32>
      %cst_85 = arith.constant 3.200000e+01 : f32
      %122 = vector.broadcast %cst_85 : f32 to vector<1x1xf32>
      %123 = arith.divf %121, %122 : vector<1x1xf32>
      %124 = vector.broadcast %123 : vector<1x1xf32> to vector<1x32xf32>
      %125 = arith.subf %115, %124 : vector<1x32xf32>
      %126 = arith.mulf %125, %125 : vector<1x32xf32>
      %cst_86 = arith.constant dense<0.000000e+00> : vector<1xf32>
      %127 = vector.multi_reduction <add>, %126, %cst_86 [1] : vector<1x32xf32> to vector<1xf32>
      %128 = vector.shape_cast %127 : vector<1xf32> to vector<1x1xf32>
      %cst_87 = arith.constant 3.200000e+01 : f32
      %129 = vector.broadcast %cst_87 : f32 to vector<1x1xf32>
      %130 = arith.divf %128, %129 : vector<1x1xf32>
      %131 = vector.broadcast %123 : vector<1x1xf32> to vector<1x32xf32>
      %132 = arith.subf %115, %131 : vector<1x32xf32>
      %cst_88 = arith.constant 9.99999974E-6 : f32
      %133 = vector.broadcast %cst_88 : f32 to vector<1x1xf32>
      %134 = arith.addf %130, %133 : vector<1x1xf32>
      %135 = math.rsqrt %134 : vector<1x1xf32>
      %136 = vector.broadcast %135 : vector<1x1xf32> to vector<1x32xf32>
      %137 = arith.mulf %132, %136 : vector<1x32xf32>
      %138 = arith.mulf %137, %117 : vector<1x32xf32>
      %139 = arith.addf %138, %119 : vector<1x32xf32>
      %c1 = arith.constant 1 : index
      %c0_89 = arith.constant 0 : index
      %c0_90 = arith.constant 0 : index
      %140 = vector.load %arg4[%c1, %c0_89, %c0_90] : memref<2x96x32xf32, #tpu.memory_space<vmem>>, vector<1x96x32xf32>
      %141 = vector.shape_cast %140 : vector<1x96x32xf32> to vector<96x32xf32>
      "tpu.trace_start"() <{level = 10 : i32, message = "nd,ed->ne"}> : () -> ()
      %cst_91 = arith.constant dense<0.000000e+00> : vector<1x96xf32>
      %142 = tpu.matmul %139, %141, %cst_91 {dimension_numbers = #tpu.dot_dimension_numbers<[1], [1], [0], [0], [0, 0, 1, 0], [], []>} : vector<1x32xf32>, vector<96x32xf32>, vector<1x96xf32> -> vector<1x96xf32>
      "tpu.trace_stop"() : () -> ()
      %c1_92 = arith.constant 1 : index
      %c0_93 = arith.constant 0 : index
      %c0_94 = arith.constant 0 : index
      %143 = vector.load %arg5[%c1_92, %c0_93, %c0_94] : memref<2x1x96xf32, #tpu.memory_space<vmem>>, vector<1x1x96xf32>
      %144 = vector.shape_cast %143 : vector<1x1x96xf32> to vector<1x96xf32>
      %145 = arith.addf %142, %144 : vector<1x96xf32>
      %146 = vector.extract_strided_slice %145 {offsets = [0, 0], sizes = [1, 32], strides = [1, 1]} : vector<1x96xf32> to vector<1x32xf32>
      %147 = vector.extract_strided_slice %145 {offsets = [0, 32], sizes = [1, 32], strides = [1, 1]} : vector<1x96xf32> to vector<1x32xf32>
      %148 = vector.extract_strided_slice %145 {offsets = [0, 64], sizes = [1, 32], strides = [1, 1]} : vector<1x96xf32> to vector<1x32xf32>
      %c7_i32_95 = arith.constant 7 : i32
      %149 = arith.addi %c7_i32_95, %24 : i32
      %150 = arith.index_cast %149 : i32 to index
      %c0_96 = arith.constant 0 : index
      %151 = vector.load %arg19[%150, %c0_96] : memref<14x32xf32, #tpu.memory_space<vmem>>, vector<1x32xf32>
      tpu.vector_store %arg19[%150, %c0_96], %147 {strides = array<i32>} : memref<14x32xf32, #tpu.memory_space<vmem>>, vector<1x32xf32>,
      %c7_i32_97 = arith.constant 7 : i32
      %152 = arith.addi %c7_i32_97, %24 : i32
      %153 = arith.index_cast %152 : i32 to index
      %c0_98 = arith.constant 0 : index
      %154 = vector.load %arg20[%153, %c0_98] : memref<14x32xf32, #tpu.memory_space<vmem>>, vector<1x32xf32>
      tpu.vector_store %arg20[%153, %c0_98], %148 {strides = array<i32>} : memref<14x32xf32, #tpu.memory_space<vmem>>, vector<1x32xf32>,
      %c7 = arith.constant 7 : index
      %c0_99 = arith.constant 0 : index
      %155 = vector.load %arg19[%c7, %c0_99] : memref<14x32xf32, #tpu.memory_space<vmem>>, vector<7x32xf32>
      %c7_100 = arith.constant 7 : index
      %c0_101 = arith.constant 0 : index
      %156 = vector.load %arg20[%c7_100, %c0_101] : memref<14x32xf32, #tpu.memory_space<vmem>>, vector<7x32xf32>
      %157 = vector.broadcast %146 : vector<1x32xf32> to vector<7x32xf32>
      %158 = arith.mulf %157, %155 : vector<7x32xf32>
      "tpu.trace_start"() <{level = 10 : i32, message = "td,dh->th"}> : () -> ()
      %cst_102 = arith.constant dense<0.000000e+00> : vector<7x4xf32>
      %159 = tpu.matmul %158, %21, %cst_102 {dimension_numbers = #tpu.dot_dimension_numbers<[1], [0], [0], [1], [0, 0, 1, 1], [], []>} : vector<7x32xf32>, vector<32x4xf32>, vector<7x4xf32> -> vector<7x4xf32>
      "tpu.trace_stop"() : () -> ()
      %cst_103 = arith.constant 0.353553385 : f32
      %160 = vector.broadcast %cst_103 : f32 to vector<7x4xf32>
      %161 = arith.mulf %159, %160 : vector<7x4xf32>
      %162 = vector.broadcast %24 : i32 to vector<7x4xi32>
      %163 = arith.cmpi sle, %7, %162 : vector<7x4xi32>
      %cst_104 = arith.constant -1.000000e+30 : f32
      %164 = vector.broadcast %cst_104 : f32 to vector<7x4xf32>
      %165 = arith.select %163, %161, %164 : vector<7x4xi1>, vector<7x4xf32>
      %cst_105 = arith.constant dense<0xFF800000> : vector<4xf32>
      %166 = vector.multi_reduction <maximumf>, %165, %cst_105 [0] : vector<7x4xf32> to vector<4xf32>
      %167 = vector.shape_cast %166 : vector<4xf32> to vector<1x4xf32>
      %168 = vector.broadcast %167 : vector<1x4xf32> to vector<7x4xf32>
      %169 = arith.subf %165, %168 : vector<7x4xf32>
      %170 = math.exp %169 : vector<7x4xf32>
      %cst_106 = arith.constant dense<0.000000e+00> : vector<4xf32>
      %171 = vector.multi_reduction <add>, %170, %cst_106 [0] : vector<7x4xf32> to vector<4xf32>
      %172 = vector.shape_cast %171 : vector<4xf32> to vector<1x4xf32>
      %173 = tpu.reciprocal %172 {approx = true} : vector<1x4xf32> -> vector<1x4xf32>
      %174 = vector.broadcast %173 : vector<1x4xf32> to vector<7x4xf32>
      %175 = arith.mulf %170, %174 : vector<7x4xf32>
      "tpu.trace_start"() <{level = 10 : i32, message = "th,dh->td"}> : () -> ()
      %cst_107 = arith.constant dense<0.000000e+00> : vector<7x32xf32>
      %176 = tpu.matmul %175, %21, %cst_107 {dimension_numbers = #tpu.dot_dimension_numbers<[1], [1], [0], [0], [0, 0, 1, 0], [], []>} : vector<7x4xf32>, vector<32x4xf32>, vector<7x32xf32> -> vector<7x32xf32>
      "tpu.trace_stop"() : () -> ()
      %177 = arith.mulf %176, %156 : vector<7x32xf32>
      %cst_108 = arith.constant dense<0.000000e+00> : vector<32xf32>
      %178 = vector.multi_reduction <add>, %177, %cst_108 [0] : vector<7x32xf32> to vector<32xf32>
      %179 = vector.shape_cast %178 : vector<32xf32> to vector<1x32xf32>
      %c1_109 = arith.constant 1 : index
      %c0_110 = arith.constant 0 : index
      %c0_111 = arith.constant 0 : index
      %180 = vector.load %arg6[%c1_109, %c0_110, %c0_111] : memref<2x32x32xf32, #tpu.memory_space<vmem>>, vector<1x32x32xf32>
      %181 = vector.shape_cast %180 : vector<1x32x32xf32> to vector<32x32xf32>
      "tpu.trace_start"() <{level = 10 : i32, message = "nd,ed->ne"}> : () -> ()
      %cst_112 = arith.constant dense<0.000000e+00> : vector<1x32xf32>
      %182 = tpu.matmul %179, %181, %cst_112 {dimension_numbers = #tpu.dot_dimension_numbers<[1], [1], [0], [0], [0, 0, 1, 0], [], []>} : vector<1x32xf32>, vector<32x32xf32>, vector<1x32xf32> -> vector<1x32xf32>
      "tpu.trace_stop"() : () -> ()
      %c1_113 = arith.constant 1 : index
      %c0_114 = arith.constant 0 : index
      %c0_115 = arith.constant 0 : index
      %183 = vector.load %arg7[%c1_113, %c0_114, %c0_115] : memref<2x1x32xf32, #tpu.memory_space<vmem>>, vector<1x1x32xf32>
      %184 = vector.shape_cast %183 : vector<1x1x32xf32> to vector<1x32xf32>
      %185 = arith.addf %182, %184 : vector<1x32xf32>
      %186 = arith.addf %139, %185 : vector<1x32xf32>
      %c1_116 = arith.constant 1 : index
      %c0_117 = arith.constant 0 : index
      %c0_118 = arith.constant 0 : index
      %187 = vector.load %arg8[%c1_116, %c0_117, %c0_118] : memref<2x1x32xf32, #tpu.memory_space<vmem>>, vector<1x1x32xf32>
      %188 = vector.shape_cast %187 : vector<1x1x32xf32> to vector<1x32xf32>
      %c1_119 = arith.constant 1 : index
      %c0_120 = arith.constant 0 : index
      %c0_121 = arith.constant 0 : index
      %189 = vector.load %arg9[%c1_119, %c0_120, %c0_121] : memref<2x1x32xf32, #tpu.memory_space<vmem>>, vector<1x1x32xf32>
      %190 = vector.shape_cast %189 : vector<1x1x32xf32> to vector<1x32xf32>
      %cst_122 = arith.constant dense<0.000000e+00> : vector<1xf32>
      %191 = vector.multi_reduction <add>, %186, %cst_122 [1] : vector<1x32xf32> to vector<1xf32>
      %192 = vector.shape_cast %191 : vector<1xf32> to vector<1x1xf32>
      %cst_123 = arith.constant 3.200000e+01 : f32
      %193 = vector.broadcast %cst_123 : f32 to vector<1x1xf32>
      %194 = arith.divf %192, %193 : vector<1x1xf32>
      %195 = vector.broadcast %194 : vector<1x1xf32> to vector<1x32xf32>
      %196 = arith.subf %186, %195 : vector<1x32xf32>
      %197 = arith.mulf %196, %196 : vector<1x32xf32>
      %cst_124 = arith.constant dense<0.000000e+00> : vector<1xf32>
      %198 = vector.multi_reduction <add>, %197, %cst_124 [1] : vector<1x32xf32> to vector<1xf32>
      %199 = vector.shape_cast %198 : vector<1xf32> to vector<1x1xf32>
      %cst_125 = arith.constant 3.200000e+01 : f32
      %200 = vector.broadcast %cst_125 : f32 to vector<1x1xf32>
      %201 = arith.divf %199, %200 : vector<1x1xf32>
      %202 = vector.broadcast %194 : vector<1x1xf32> to vector<1x32xf32>
      %203 = arith.subf %186, %202 : vector<1x32xf32>
      %cst_126 = arith.constant 9.99999974E-6 : f32
      %204 = vector.broadcast %cst_126 : f32 to vector<1x1xf32>
      %205 = arith.addf %201, %204 : vector<1x1xf32>
      %206 = math.rsqrt %205 : vector<1x1xf32>
      %207 = vector.broadcast %206 : vector<1x1xf32> to vector<1x32xf32>
      %208 = arith.mulf %203, %207 : vector<1x32xf32>
      %209 = arith.mulf %208, %188 : vector<1x32xf32>
      %210 = arith.addf %209, %190 : vector<1x32xf32>
      %c1_127 = arith.constant 1 : index
      %c0_128 = arith.constant 0 : index
      %c0_129 = arith.constant 0 : index
      %211 = vector.load %arg10[%c1_127, %c0_128, %c0_129] : memref<2x128x32xf32, #tpu.memory_space<vmem>>, vector<1x128x32xf32>
      %212 = vector.shape_cast %211 : vector<1x128x32xf32> to vector<128x32xf32>
      "tpu.trace_start"() <{level = 10 : i32, message = "nd,fd->nf"}> : () -> ()
      %cst_130 = arith.constant dense<0.000000e+00> : vector<1x128xf32>
      %213 = tpu.matmul %210, %212, %cst_130 {dimension_numbers = #tpu.dot_dimension_numbers<[1], [1], [0], [0], [0, 0, 1, 0], [], []>} : vector<1x32xf32>, vector<128x32xf32>, vector<1x128xf32> -> vector<1x128xf32>
      "tpu.trace_stop"() : () -> ()
      %c1_131 = arith.constant 1 : index
      %c0_132 = arith.constant 0 : index
      %c0_133 = arith.constant 0 : index
      %214 = vector.load %arg11[%c1_131, %c0_132, %c0_133] : memref<2x1x128xf32, #tpu.memory_space<vmem>>, vector<1x1x128xf32>
      %215 = vector.shape_cast %214 : vector<1x1x128xf32> to vector<1x128xf32>
      %216 = arith.addf %213, %215 : vector<1x128xf32>
      %cst_134 = arith.constant 0.000000e+00 : f32
      %217 = vector.broadcast %cst_134 : f32 to vector<1x128xf32>
      %218 = arith.maximumf %216, %217 : vector<1x128xf32>
      %c1_135 = arith.constant 1 : index
      %c0_136 = arith.constant 0 : index
      %c0_137 = arith.constant 0 : index
      %219 = vector.load %arg12[%c1_135, %c0_136, %c0_137] : memref<2x32x128xf32, #tpu.memory_space<vmem>>, vector<1x32x128xf32>
      %220 = vector.shape_cast %219 : vector<1x32x128xf32> to vector<32x128xf32>
      "tpu.trace_start"() <{level = 10 : i32, message = "nf,df->nd"}> : () -> ()
      %cst_138 = arith.constant dense<0.000000e+00> : vector<1x32xf32>
      %221 = tpu.matmul %218, %220, %cst_138 {dimension_numbers = #tpu.dot_dimension_numbers<[1], [1], [0], [0], [0, 0, 1, 0], [], []>} : vector<1x128xf32>, vector<32x128xf32>, vector<1x32xf32> -> vector<1x32xf32>
      "tpu.trace_stop"() : () -> ()
      %c1_139 = arith.constant 1 : index
      %c0_140 = arith.constant 0 : index
      %c0_141 = arith.constant 0 : index
      %222 = vector.load %arg13[%c1_139, %c0_140, %c0_141] : memref<2x1x32xf32, #tpu.memory_space<vmem>>, vector<1x1x32xf32>
      %223 = vector.shape_cast %222 : vector<1x1x32xf32> to vector<1x32xf32>
      %224 = arith.addf %221, %223 : vector<1x32xf32>
      %225 = arith.addf %210, %224 : vector<1x32xf32>
      %c1_142 = arith.constant 1 : index
      %c0_143 = arith.constant 0 : index
      %c0_144 = arith.constant 0 : index
      %226 = vector.load %arg14[%c1_142, %c0_143, %c0_144] : memref<2x1x32xf32, #tpu.memory_space<vmem>>, vector<1x1x32xf32>
      %227 = vector.shape_cast %226 : vector<1x1x32xf32> to vector<1x32xf32>
      %c1_145 = arith.constant 1 : index
      %c0_146 = arith.constant 0 : index
      %c0_147 = arith.constant 0 : index
      %228 = vector.load %arg15[%c1_145, %c0_146, %c0_147] : memref<2x1x32xf32, #tpu.memory_space<vmem>>, vector<1x1x32xf32>
      %229 = vector.shape_cast %228 : vector<1x1x32xf32> to vector<1x32xf32>
      %cst_148 = arith.constant dense<0.000000e+00> : vector<1xf32>
      %230 = vector.multi_reduction <add>, %225, %cst_148 [1] : vector<1x32xf32> to vector<1xf32>
      %231 = vector.shape_cast %230 : vector<1xf32> to vector<1x1xf32>
      %cst_149 = arith.constant 3.200000e+01 : f32
      %232 = vector.broadcast %cst_149 : f32 to vector<1x1xf32>
      %233 = arith.divf %231, %232 : vector<1x1xf32>
      %234 = vector.broadcast %233 : vector<1x1xf32> to vector<1x32xf32>
      %235 = arith.subf %225, %234 : vector<1x32xf32>
      %236 = arith.mulf %235, %235 : vector<1x32xf32>
      %cst_150 = arith.constant dense<0.000000e+00> : vector<1xf32>
      %237 = vector.multi_reduction <add>, %236, %cst_150 [1] : vector<1x32xf32> to vector<1xf32>
      %238 = vector.shape_cast %237 : vector<1xf32> to vector<1x1xf32>
      %cst_151 = arith.constant 3.200000e+01 : f32
      %239 = vector.broadcast %cst_151 : f32 to vector<1x1xf32>
      %240 = arith.divf %238, %239 : vector<1x1xf32>
      %241 = vector.broadcast %233 : vector<1x1xf32> to vector<1x32xf32>
      %242 = arith.subf %225, %241 : vector<1x32xf32>
      %cst_152 = arith.constant 9.99999974E-6 : f32
      %243 = vector.broadcast %cst_152 : f32 to vector<1x1xf32>
      %244 = arith.addf %240, %243 : vector<1x1xf32>
      %245 = math.rsqrt %244 : vector<1x1xf32>
      %246 = vector.broadcast %245 : vector<1x1xf32> to vector<1x32xf32>
      %247 = arith.mulf %242, %246 : vector<1x32xf32>
      %248 = arith.mulf %247, %227 : vector<1x32xf32>
      %249 = arith.addf %248, %229 : vector<1x32xf32>
      %c0_153 = arith.constant 0 : index
      %c0_154 = arith.constant 0 : index
      %250 = vector.load %arg16[%c0_153, %c0_154] : memref<4x32xf32, #tpu.memory_space<vmem>>, vector<4x32xf32>
      "tpu.trace_start"() <{level = 10 : i32, message = "nd,od->no"}> : () -> ()
      %cst_155 = arith.constant dense<0.000000e+00> : vector<1x4xf32>
      %251 = tpu.matmul %249, %250, %cst_155 {dimension_numbers = #tpu.dot_dimension_numbers<[1], [1], [0], [0], [0, 0, 1, 0], [], []>} : vector<1x32xf32>, vector<4x32xf32>, vector<1x4xf32> -> vector<1x4xf32>
      "tpu.trace_stop"() : () -> ()
      %c0_156 = arith.constant 0 : index
      %c0_157 = arith.constant 0 : index
      %252 = vector.load %arg17[%c0_156, %c0_157] : memref<1x4xf32, #tpu.memory_space<vmem>>, vector<1x4xf32>
      %253 = arith.addf %251, %252 : vector<1x4xf32>
      %c0_158 = arith.constant 0 : index
      %254 = arith.index_cast %24 : i32 to index
      %c0_159 = arith.constant 0 : index
      %255 = vector.load %arg18[%c0_158, %254, %c0_159] : memref<1x7x4xf32, #tpu.memory_space<vmem>>, vector<1x1x4xf32>
      %256 = vector.shape_cast %255 : vector<1x1x4xf32> to vector<1x4xf32>
      %257 = vector.shape_cast %253 : vector<1x4xf32> to vector<1x1x4xf32>
      tpu.vector_store %arg18[%c0_158, %254, %c0_159], %257 {strides = array<i32>} : memref<1x7x4xf32, #tpu.memory_space<vmem>>, vector<1x1x4xf32>,
      %c0_160 = arith.constant 0 : index
      %c0_161 = arith.constant 0 : index
      %258 = vector.load %arg21[%c0_160, %c0_161] : memref<1x4xf32, #tpu.memory_space<vmem>>, vector<1x4xf32>
      tpu.vector_store %arg21[%c0_160, %c0_161], %253 {strides = array<i32>} : memref<1x4xf32, #tpu.memory_space<vmem>>, vector<1x4xf32>,
    }
    %c7_i32_13 = arith.constant 7 : i32
    return
  }
  func.func @transform_0(%arg0: i32) -> (i32, i32, i32) {
    %c0_i32 = arith.constant 0 : i32
    %c0_i32_0 = arith.constant 0 : i32
    %c0_i32_1 = arith.constant 0 : i32
    return %arg0, %c0_i32, %c0_i32_0 : i32, i32, i32
  }
  func.func @transform_1(%arg0: i32) -> (i32, i32) {
    %c0_i32 = arith.constant 0 : i32
    %c0_i32_0 = arith.constant 0 : i32
    %c0_i32_1 = arith.constant 0 : i32
    return %c0_i32, %c0_i32_0 : i32, i32
  }
  func.func @transform_2(%arg0: i32) -> (i32, i32) {
    %c0_i32 = arith.constant 0 : i32
    %c0_i32_0 = arith.constant 0 : i32
    %c0_i32_1 = arith.constant 0 : i32
    return %c0_i32, %c0_i32_0 : i32, i32
  }
  func.func @transform_3(%arg0: i32) -> (i32, i32, i32) {
    %c0_i32 = arith.constant 0 : i32
    %c0_i32_0 = arith.constant 0 : i32
    %c0_i32_1 = arith.constant 0 : i32
    %c0_i32_2 = arith.constant 0 : i32
    return %c0_i32, %c0_i32_0, %c0_i32_1 : i32, i32, i32
  }
  func.func @transform_4(%arg0: i32) -> (i32, i32, i32) {
    %c0_i32 = arith.constant 0 : i32
    %c0_i32_0 = arith.constant 0 : i32
    %c0_i32_1 = arith.constant 0 : i32
    %c0_i32_2 = arith.constant 0 : i32
    return %c0_i32, %c0_i32_0, %c0_i32_1 : i32, i32, i32
  }
  func.func @transform_5(%arg0: i32) -> (i32, i32, i32) {
    %c0_i32 = arith.constant 0 : i32
    %c0_i32_0 = arith.constant 0 : i32
    %c0_i32_1 = arith.constant 0 : i32
    %c0_i32_2 = arith.constant 0 : i32
    return %c0_i32, %c0_i32_0, %c0_i32_1 : i32, i32, i32
  }
  func.func @transform_6(%arg0: i32) -> (i32, i32, i32) {
    %c0_i32 = arith.constant 0 : i32
    %c0_i32_0 = arith.constant 0 : i32
    %c0_i32_1 = arith.constant 0 : i32
    %c0_i32_2 = arith.constant 0 : i32
    return %c0_i32, %c0_i32_0, %c0_i32_1 : i32, i32, i32
  }
  func.func @transform_7(%arg0: i32) -> (i32, i32, i32) {
    %c0_i32 = arith.constant 0 : i32
    %c0_i32_0 = arith.constant 0 : i32
    %c0_i32_1 = arith.constant 0 : i32
    %c0_i32_2 = arith.constant 0 : i32
    return %c0_i32, %c0_i32_0, %c0_i32_1 : i32, i32, i32
  }
  func.func @transform_8(%arg0: i32) -> (i32, i32, i32) {
    %c0_i32 = arith.constant 0 : i32
    %c0_i32_0 = arith.constant 0 : i32
    %c0_i32_1 = arith.constant 0 : i32
    %c0_i32_2 = arith.constant 0 : i32
    return %c0_i32, %c0_i32_0, %c0_i32_1 : i32, i32, i32
  }
  func.func @transform_9(%arg0: i32) -> (i32, i32, i32) {
    %c0_i32 = arith.constant 0 : i32
    %c0_i32_0 = arith.constant 0 : i32
    %c0_i32_1 = arith.constant 0 : i32
    %c0_i32_2 = arith.constant 0 : i32
    return %c0_i32, %c0_i32_0, %c0_i32_1 : i32, i32, i32
  }
  func.func @transform_10(%arg0: i32) -> (i32, i32, i32) {
    %c0_i32 = arith.constant 0 : i32
    %c0_i32_0 = arith.constant 0 : i32
    %c0_i32_1 = arith.constant 0 : i32
    %c0_i32_2 = arith.constant 0 : i32
    return %c0_i32, %c0_i32_0, %c0_i32_1 : i32, i32, i32
  }
  func.func @transform_11(%arg0: i32) -> (i32, i32, i32) {
    %c0_i32 = arith.constant 0 : i32
    %c0_i32_0 = arith.constant 0 : i32
    %c0_i32_1 = arith.constant 0 : i32
    %c0_i32_2 = arith.constant 0 : i32
    return %c0_i32, %c0_i32_0, %c0_i32_1 : i32, i32, i32
  }
  func.func @transform_12(%arg0: i32) -> (i32, i32, i32) {
    %c0_i32 = arith.constant 0 : i32
    %c0_i32_0 = arith.constant 0 : i32
    %c0_i32_1 = arith.constant 0 : i32
    %c0_i32_2 = arith.constant 0 : i32
    return %c0_i32, %c0_i32_0, %c0_i32_1 : i32, i32, i32
  }
  func.func @transform_13(%arg0: i32) -> (i32, i32, i32) {
    %c0_i32 = arith.constant 0 : i32
    %c0_i32_0 = arith.constant 0 : i32
    %c0_i32_1 = arith.constant 0 : i32
    %c0_i32_2 = arith.constant 0 : i32
    return %c0_i32, %c0_i32_0, %c0_i32_1 : i32, i32, i32
  }
  func.func @transform_14(%arg0: i32) -> (i32, i32, i32) {
    %c0_i32 = arith.constant 0 : i32
    %c0_i32_0 = arith.constant 0 : i32
    %c0_i32_1 = arith.constant 0 : i32
    %c0_i32_2 = arith.constant 0 : i32
    return %c0_i32, %c0_i32_0, %c0_i32_1 : i32, i32, i32
  }
  func.func @transform_15(%arg0: i32) -> (i32, i32) {
    %c0_i32 = arith.constant 0 : i32
    %c0_i32_0 = arith.constant 0 : i32
    %c0_i32_1 = arith.constant 0 : i32
    return %c0_i32, %c0_i32_0 : i32, i32
  }
  func.func @transform_16(%arg0: i32) -> (i32, i32) {
    %c0_i32 = arith.constant 0 : i32
    %c0_i32_0 = arith.constant 0 : i32
    %c0_i32_1 = arith.constant 0 : i32
    return %c0_i32, %c0_i32_0 : i32, i32
  }
  func.func @transform_17(%arg0: i32) -> (i32, i32, i32) {
    %c0_i32 = arith.constant 0 : i32
    %c0_i32_0 = arith.constant 0 : i32
    %c0_i32_1 = arith.constant 0 : i32
    return %arg0, %c0_i32, %c0_i32_0 : i32, i32, i32
  }
}

</mosaic_0001>

<llo_original>
// kernel: time_series_gpt_forward.1
$region0: #{time_series_gpt_forward.1}
  #allocation0 [shape = 'u32[]', space=smem, size = 0x4, offset = 0x4, fixed_abs, tag = 'smem constant byte address 0x4 - core index']
  #allocation1 [shape = 'u32[144,128]{1,0:T(1,128)}', space=vmem, size = 0x12000, scoped, tag = 'internal scratch']
  #allocation2 [shape = 'f32[14,32]{1,0:T(8,128)}', space=vmem, size = 0x2000, scoped, tag = 'scratch operand']
  #allocation3 [shape = 'f32[14,32]{1,0:T(8,128)}', space=vmem, size = 0x2000, scoped, tag = 'scratch operand']
  #allocation4 [shape = 'f32[1,4]{1,0:T(1,128)}', space=vmem, size = 0x200, scoped, tag = 'scratch operand']
  %s0 = inlined_call_operand.vmem [shape: f32[2,1,4], index: 0, kind: input, shape index: {}]
  %s1 = inlined_call_operand.vmem [shape: f32[32,4], index: 1, kind: input, shape index: {}]
  %s2 = inlined_call_operand.vmem [shape: f32[1,32], index: 2, kind: input, shape index: {}]
  %s3 = inlined_call_operand.vmem [shape: f32[2,96,32], index: 3, kind: input, shape index: {}]
  %s4 = inlined_call_operand.vmem [shape: f32[2,1,96], index: 4, kind: input, shape index: {}]
  %s5 = inlined_call_operand.vmem [shape: f32[2,32,32], index: 5, kind: input, shape index: {}]
  %s6 = inlined_call_operand.vmem [shape: f32[2,1,32], index: 6, kind: input, shape index: {}]
  %s7 = inlined_call_operand.vmem [shape: f32[2,1,32], index: 7, kind: input, shape index: {}]
  %s8 = inlined_call_operand.vmem [shape: f32[2,1,32], index: 8, kind: input, shape index: {}]
  %s9 = inlined_call_operand.vmem [shape: f32[2,128,32], index: 9, kind: input, shape index: {}]
  %s10 = inlined_call_operand.vmem [shape: f32[2,1,128], index: 10, kind: input, shape index: {}]
  %s11 = inlined_call_operand.vmem [shape: f32[2,32,128], index: 11, kind: input, shape index: {}]
  %s12 = inlined_call_operand.vmem [shape: f32[2,1,32], index: 12, kind: input, shape index: {}]
  %s13 = inlined_call_operand.vmem [shape: f32[2,1,32], index: 13, kind: input, shape index: {}]
  %s14 = inlined_call_operand.vmem [shape: f32[2,1,32], index: 14, kind: input, shape index: {}]
  %s15 = inlined_call_operand.vmem [shape: f32[4,32], index: 15, kind: input, shape index: {}]
  %s16 = inlined_call_operand.vmem [shape: f32[1,4], index: 16, kind: input, shape index: {}]
  %s17 = inlined_call_operand.vmem [shape: f32[2,7,4], index: 17, kind: output, shape index: {}]
  %s18 = sld [smem:[#allocation0]]
  $region108: #{time_series_gpt_forward.1} parent=0
    _
  %s20 = ssub.s32 1, %s18
  %s21 = scalar_select 0, %s20, %s18
  loop: start=0, step=1, limit=4
  $region2: #{time_series_gpt_forward.1} parent=0 // loop_pre_header
    _
  $region3: #{time_series_gpt_forward.1} parent=0 // loop_header
    %s23 = sphi 0, %s27
    %p24 = scmp.ge.s32.totalorder %s23, 4
    %s33 = sphi 0, %s35
    %s36 = sphi 0, %s33
    %s37 = sphi 0, %s36
    %s53 = sphi 0, %s37
    %s57 = sphi 0, %s57
    %s59 = sphi 0, %s57
    %s60 = sphi 0, %s59
    %s74 = sphi 0, %s60
    %s78 = sphi 0, %s78
    %s80 = sphi 0, %s78
    %s81 = sphi 0, %s80
    %s95 = sphi 0, %s81
    %s99 = sphi 0, %s99
    %s101 = sphi 0, %s99
    %s102 = sphi 0, %s101
    %s116 = sphi 0, %s102
    %s120 = sphi 0, %s120
    %s122 = sphi 0, %s120
    %s123 = sphi 0, %s122
    %s137 = sphi 0, %s123
    %s141 = sphi 0, %s141
    %s143 = sphi 0, %s141
    %s144 = sphi 0, %s143
    %s158 = sphi 0, %s144
    %s162 = sphi 0, %s162
    %s164 = sphi 0, %s162
    %s165 = sphi 0, %s164
    %s179 = sphi 0, %s165
    %s183 = sphi 0, %s183
    %s185 = sphi 0, %s183
    %s186 = sphi 0, %s185
    %s200 = sphi 0, %s186
    %s204 = sphi 0, %s204
    %s206 = sphi 0, %s204
    %s207 = sphi 0, %s206
    %s221 = sphi 0, %s207
    %s225 = sphi 0, %s225
    %s227 = sphi 0, %s225
    %s228 = sphi 0, %s227
    %s242 = sphi 0, %s228
    %s246 = sphi 0, %s246
    %s248 = sphi 0, %s246
    %s249 = sphi 0, %s248
    %s263 = sphi 0, %s249
    %s267 = sphi 0, %s267
    %s269 = sphi 0, %s267
    %s270 = sphi 0, %s269
    %s284 = sphi 0, %s270
    %s288 = sphi 0, %s288
    %s290 = sphi 0, %s288
    %s291 = sphi 0, %s290
    %s305 = sphi 0, %s291
    %s309 = sphi 0, %s309
    %s311 = sphi 0, %s309
    %s312 = sphi 0, %s311
    %s326 = sphi 0, %s312
    %s330 = sphi 0, %s330
    %s332 = sphi 0, %s330
    %s333 = sphi 0, %s332
    %s347 = sphi 0, %s333
    %s351 = sphi 0, %s351
    %s353 = sphi 0, %s351
    %s354 = sphi 0, %s353
    %s368 = sphi 0, %s354
    %s372 = sphi 0, %s372
    %s374 = sphi 0, %s372
    %s375 = sphi 0, %s374
    %s389 = sphi 0, %s375
    %s395 = sphi 0, %s397
    %s398 = sphi 0, %s395
    %s399 = sphi 0, %s398
    %s415 = sphi 0, %s399
  $region4: #{time_series_gpt_forward.1} parent=0 // loop_header_branch
    %26 = sbr.rel (%p24) target = $region8
  $region5: #{time_series_gpt_forward.1} parent=0 // loop_body
    %s28 = ssub.s32 %s23, 1
    %s29 = ssub.s32 %s23, 2
    %s30 = sadd.s32 %s23, 1
    %s31 = ssub.s32 %s23, %s30
    %p32 = scmp.eq.s32.totalorder %s31, 0
    %s34 = sadd.s32 %s33, 1
    %s35 = scalar_select %p32, %s33, %s34
    %p38 = pneg %p32
    %p39 = scmp.eq.s32.totalorder %s23, 1
    %p40 = por %p38, %p39
    %p41 = scmp.ne.s32.totalorder %s33, %s36
    %p42 = scmp.eq.s32.totalorder %s23, 0
    %p43 = por %p41, %p42
    %p44 = scmp.ne.s32.totalorder %s33, %s36
    %p45 = scmp.eq.s32.totalorder %s28, 1
    %p46 = por %p44, %p45
    %p47 = scmp.ne.s32.totalorder %s36, %s37
    %p48 = scmp.eq.s32.totalorder %s28, 0
    %p49 = por %p47, %p48
    %p50 = scmp.ne.s32.totalorder %s36, %s37
    %p51 = scmp.eq.s32.totalorder %s29, 1
    %p52 = por %p50, %p51
    %p54 = scmp.ne.s32.totalorder %s37, %s53
    %p55 = scmp.eq.s32.totalorder %s29, 0
    %p56 = por %p54, %p55
    %s58 = sadd.s32 %s57, 1
    %p61 = scmp.eq.s32.totalorder %s23, 1
    %p62 = scmp.ne.s32.totalorder %s57, %s59
    %p63 = scmp.eq.s32.totalorder %s23, 0
    %p64 = por %p62, %p63
    %p65 = scmp.ne.s32.totalorder %s57, %s59
    %p66 = scmp.eq.s32.totalorder %s28, 1
    %p67 = por %p65, %p66
    %p68 = scmp.ne.s32.totalorder %s59, %s60
    %p69 = scmp.eq.s32.totalorder %s28, 0
    %p70 = por %p68, %p69
    %p71 = scmp.ne.s32.totalorder %s59, %s60
    %p72 = scmp.eq.s32.totalorder %s29, 1
    %p73 = por %p71, %p72
    %p75 = scmp.ne.s32.totalorder %s60, %s74
    %p76 = scmp.eq.s32.totalorder %s29, 0
    %p77 = por %p75, %p76
    %s79 = sadd.s32 %s78, 1
    %p82 = scmp.eq.s32.totalorder %s23, 1
    %p83 = scmp.ne.s32.totalorder %s78, %s80
    %p84 = scmp.eq.s32.totalorder %s23, 0
    %p85 = por %p83, %p84
    %p86 = scmp.ne.s32.totalorder %s78, %s80
    %p87 = scmp.eq.s32.totalorder %s28, 1
    %p88 = por %p86, %p87
    %p89 = scmp.ne.s32.totalorder %s80, %s81
    %p90 = scmp.eq.s32.totalorder %s28, 0
    %p91 = por %p89, %p90
    %p92 = scmp.ne.s32.totalorder %s80, %s81
    %p93 = scmp.eq.s32.totalorder %s29, 1
    %p94 = por %p92, %p93
    %p96 = scmp.ne.s32.totalorder %s81, %s95
    %p97 = scmp.eq.s32.totalorder %s29, 0
    %p98 = por %p96, %p97
    %s100 = sadd.s32 %s99, 1
    %p103 = scmp.eq.s32.totalorder %s23, 1
    %p104 = scmp.ne.s32.totalorder %s99, %s101
    %p105 = scmp.eq.s32.totalorder %s23, 0
    %p106 = por %p104, %p105
    %p107 = scmp.ne.s32.totalorder %s99, %s101
    %p108 = scmp.eq.s32.totalorder %s28, 1
    %p109 = por %p107, %p108
    %p110 = scmp.ne.s32.totalorder %s101, %s102
    %p111 = scmp.eq.s32.totalorder %s28, 0
    %p112 = por %p110, %p111
    %p113 = scmp.ne.s32.totalorder %s101, %s102
    %p114 = scmp.eq.s32.totalorder %s29, 1
    %p115 = por %p113, %p114
    %p117 = scmp.ne.s32.totalorder %s102, %s116
    %p118 = scmp.eq.s32.totalorder %s29, 0
    %p119 = por %p117, %p118
    %s121 = sadd.s32 %s120, 1
    %p124 = scmp.eq.s32.totalorder %s23, 1
    %p125 = scmp.ne.s32.totalorder %s120, %s122
    %p126 = scmp.eq.s32.totalorder %s23, 0
    %p127 = por %p125, %p126
    %p128 = scmp.ne.s32.totalorder %s120, %s122
    %p129 = scmp.eq.s32.totalorder %s28, 1
    %p130 = por %p128, %p129
    %p131 = scmp.ne.s32.totalorder %s122, %s123
    %p132 = scmp.eq.s32.totalorder %s28, 0
    %p133 = por %p131, %p132
    %p134 = scmp.ne.s32.totalorder %s122, %s123
    %p135 = scmp.eq.s32.totalorder %s29, 1
    %p136 = por %p134, %p135
    %p138 = scmp.ne.s32.totalorder %s123, %s137
    %p139 = scmp.eq.s32.totalorder %s29, 0
    %p140 = por %p138, %p139
    %s142 = sadd.s32 %s141, 1
    %p145 = scmp.eq.s32.totalorder %s23, 1
    %p146 = scmp.ne.s32.totalorder %s141, %s143
    %p147 = scmp.eq.s32.totalorder %s23, 0
    %p148 = por %p146, %p147
    %p149 = scmp.ne.s32.totalorder %s141, %s143
    %p150 = scmp.eq.s32.totalorder %s28, 1
    %p151 = por %p149, %p150
    %p152 = scmp.ne.s32.totalorder %s143, %s144
    %p153 = scmp.eq.s32.totalorder %s28, 0
    %p154 = por %p152, %p153
    %p155 = scmp.ne.s32.totalorder %s143, %s144
    %p156 = scmp.eq.s32.totalorder %s29, 1
    %p157 = por %p155, %p156
    %p159 = scmp.ne.s32.totalorder %s144, %s158
    %p160 = scmp.eq.s32.totalorder %s29, 0
    %p161 = por %p159, %p160
    %s163 = sadd.s32 %s162, 1
    %p166 = scmp.eq.s32.totalorder %s23, 1
    %p167 = scmp.ne.s32.totalorder %s162, %s164
    %p168 = scmp.eq.s32.totalorder %s23, 0
    %p169 = por %p167, %p168
    %p170 = scmp.ne.s32.totalorder %s162, %s164
    %p171 = scmp.eq.s32.totalorder %s28, 1
    %p172 = por %p170, %p171
    %p173 = scmp.ne.s32.totalorder %s164, %s165
    %p174 = scmp.eq.s32.totalorder %s28, 0
    %p175 = por %p173, %p174
    %p176 = scmp.ne.s32.totalorder %s164, %s165
    %p177 = scmp.eq.s32.totalorder %s29, 1
    %p178 = por %p176, %p177
    %p180 = scmp.ne.s32.totalorder %s165, %s179
    %p181 = scmp.eq.s32.totalorder %s29, 0
    %p182 = por %p180, %p181
    %s184 = sadd.s32 %s183, 1
    %p187 = scmp.eq.s32.totalorder %s23, 1
    %p188 = scmp.ne.s32.totalorder %s183, %s185
    %p189 = scmp.eq.s32.totalorder %s23, 0
    %p190 = por %p188, %p189
    %p191 = scmp.ne.s32.totalorder %s183, %s185
    %p192 = scmp.eq.s32.totalorder %s28, 1
    %p193 = por %p191, %p192
    %p194 = scmp.ne.s32.totalorder %s185, %s186
    %p195 = scmp.eq.s32.totalorder %s28, 0
    %p196 = por %p194, %p195
    %p197 = scmp.ne.s32.totalorder %s185, %s186
    %p198 = scmp.eq.s32.totalorder %s29, 1
    %p199 = por %p197, %p198
    %p201 = scmp.ne.s32.totalorder %s186, %s200
    %p202 = scmp.eq.s32.totalorder %s29, 0
    %p203 = por %p201, %p202
    %s205 = sadd.s32 %s204, 1
    %p208 = scmp.eq.s32.totalorder %s23, 1
    %p209 = scmp.ne.s32.totalorder %s204, %s206
    %p210 = scmp.eq.s32.totalorder %s23, 0
    %p211 = por %p209, %p210
    %p212 = scmp.ne.s32.totalorder %s204, %s206
    %p213 = scmp.eq.s32.totalorder %s28, 1
    %p214 = por %p212, %p213
    %p215 = scmp.ne.s32.totalorder %s206, %s207
    %p216 = scmp.eq.s32.totalorder %s28, 0
    %p217 = por %p215, %p216
    %p218 = scmp.ne.s32.totalorder %s206, %s207
    %p219 = scmp.eq.s32.totalorder %s29, 1
    %p220 = por %p218, %p219
    %p222 = scmp.ne.s32.totalorder %s207, %s221
    %p223 = scmp.eq.s32.totalorder %s29, 0
    %p224 = por %p222, %p223
    %s226 = sadd.s32 %s225, 1
    %p229 = scmp.eq.s32.totalorder %s23, 1
    %p230 = scmp.ne.s32.totalorder %s225, %s227
    %p231 = scmp.eq.s32.totalorder %s23, 0
    %p232 = por %p230, %p231
    %p233 = scmp.ne.s32.totalorder %s225, %s227
    %p234 = scmp.eq.s32.totalorder %s28, 1
    %p235 = por %p233, %p234
    %p236 = scmp.ne.s32.totalorder %s227, %s228
    %p237 = scmp.eq.s32.totalorder %s28, 0
    %p238 = por %p236, %p237
    %p239 = scmp.ne.s32.totalorder %s227, %s228
    %p240 = scmp.eq.s32.totalorder %s29, 1
    %p241 = por %p239, %p240
    %p243 = scmp.ne.s32.totalorder %s228, %s242
    %p244 = scmp.eq.s32.totalorder %s29, 0
    %p245 = por %p243, %p244
    %s247 = sadd.s32 %s246, 1
    %p250 = scmp.eq.s32.totalorder %s23, 1
    %p251 = scmp.ne.s32.totalorder %s246, %s248
    %p252 = scmp.eq.s32.totalorder %s23, 0
    %p253 = por %p251, %p252
    %p254 = scmp.ne.s32.totalorder %s246, %s248
    %p255 = scmp.eq.s32.totalorder %s28, 1
    %p256 = por %p254, %p255
    %p257 = scmp.ne.s32.totalorder %s248, %s249
    %p258 = scmp.eq.s32.totalorder %s28, 0
    %p259 = por %p257, %p258
    %p260 = scmp.ne.s32.totalorder %s248, %s249
    %p261 = scmp.eq.s32.totalorder %s29, 1
    %p262 = por %p260, %p261
    %p264 = scmp.ne.s32.totalorder %s249, %s263
    %p265 = scmp.eq.s32.totalorder %s29, 0
    %p266 = por %p264, %p265
    %s268 = sadd.s32 %s267, 1
    %p271 = scmp.eq.s32.totalorder %s23, 1
    %p272 = scmp.ne.s32.totalorder %s267, %s269
    %p273 = scmp.eq.s32.totalorder %s23, 0
    %p274 = por %p272, %p273
    %p275 = scmp.ne.s32.totalorder %s267, %s269
    %p276 = scmp.eq.s32.totalorder %s28, 1
    %p277 = por %p275, %p276
    %p278 = scmp.ne.s32.totalorder %s269, %s270
    %p279 = scmp.eq.s32.totalorder %s28, 0
    %p280 = por %p278, %p279
    %p281 = scmp.ne.s32.totalorder %s269, %s270
    %p282 = scmp.eq.s32.totalorder %s29, 1
    %p283 = por %p281, %p282
    %p285 = scmp.ne.s32.totalorder %s270, %s284
    %p286 = scmp.eq.s32.totalorder %s29, 0
    %p287 = por %p285, %p286
    %s289 = sadd.s32 %s288, 1
    %p292 = scmp.eq.s32.totalorder %s23, 1
    %p293 = scmp.ne.s32.totalorder %s288, %s290
    %p294 = scmp.eq.s32.totalorder %s23, 0
    %p295 = por %p293, %p294
    %p296 = scmp.ne.s32.totalorder %s288, %s290
    %p297 = scmp.eq.s32.totalorder %s28, 1
    %p298 = por %p296, %p297
    %p299 = scmp.ne.s32.totalorder %s290, %s291
    %p300 = scmp.eq.s32.totalorder %s28, 0
    %p301 = por %p299, %p300
    %p302 = scmp.ne.s32.totalorder %s290, %s291
    %p303 = scmp.eq.s32.totalorder %s29, 1
    %p304 = por %p302, %p303
    %p306 = scmp.ne.s32.totalorder %s291, %s305
    %p307 = scmp.eq.s32.totalorder %s29, 0
    %p308 = por %p306, %p307
    %s310 = sadd.s32 %s309, 1
    %p313 = scmp.eq.s32.totalorder %s23, 1
    %p314 = scmp.ne.s32.totalorder %s309, %s311
    %p315 = scmp.eq.s32.totalorder %s23, 0
    %p316 = por %p314, %p315
    %p317 = scmp.ne.s32.totalorder %s309, %s311
    %p318 = scmp.eq.s32.totalorder %s28, 1
    %p319 = por %p317, %p318
    %p320 = scmp.ne.s32.totalorder %s311, %s312
    %p321 = scmp.eq.s32.totalorder %s28, 0
    %p322 = por %p320, %p321
    %p323 = scmp.ne.s32.totalorder %s311, %s312
    %p324 = scmp.eq.s32.totalorder %s29, 1
    %p325 = por %p323, %p324
    %p327 = scmp.ne.s32.totalorder %s312, %s326
    %p328 = scmp.eq.s32.totalorder %s29, 0
    %p329 = por %p327, %p328
    %s331 = sadd.s32 %s330, 1
    %p334 = scmp.eq.s32.totalorder %s23, 1
    %p335 = scmp.ne.s32.totalorder %s330, %s332
    %p336 = scmp.eq.s32.totalorder %s23, 0
    %p337 = por %p335, %p336
    %p338 = scmp.ne.s32.totalorder %s330, %s332
    %p339 = scmp.eq.s32.totalorder %s28, 1
    %p340 = por %p338, %p339
    %p341 = scmp.ne.s32.totalorder %s332, %s333
    %p342 = scmp.eq.s32.totalorder %s28, 0
    %p343 = por %p341, %p342
    %p344 = scmp.ne.s32.totalorder %s332, %s333
    %p345 = scmp.eq.s32.totalorder %s29, 1
    %p346 = por %p344, %p345
    %p348 = scmp.ne.s32.totalorder %s333, %s347
    %p349 = scmp.eq.s32.totalorder %s29, 0
    %p350 = por %p348, %p349
    %s352 = sadd.s32 %s351, 1
    %p355 = scmp.eq.s32.totalorder %s23, 1
    %p356 = scmp.ne.s32.totalorder %s351, %s353
    %p357 = scmp.eq.s32.totalorder %s23, 0
    %p358 = por %p356, %p357
    %p359 = scmp.ne.s32.totalorder %s351, %s353
    %p360 = scmp.eq.s32.totalorder %s28, 1
    %p361 = por %p359, %p360
    %p362 = scmp.ne.s32.totalorder %s353, %s354
    %p363 = scmp.eq.s32.totalorder %s28, 0
    %p364 = por %p362, %p363
    %p365 = scmp.ne.s32.totalorder %s353, %s354
    %p366 = scmp.eq.s32.totalorder %s29, 1
    %p367 = por %p365, %p366
    %p369 = scmp.ne.s32.totalorder %s354, %s368
    %p370 = scmp.eq.s32.totalorder %s29, 0
    %p371 = por %p369, %p370
    %s373 = sadd.s32 %s372, 1
    %p376 = scmp.eq.s32.totalorder %s23, 1
    %p377 = scmp.ne.s32.totalorder %s372, %s374
    %p378 = scmp.eq.s32.totalorder %s23, 0
    %p379 = por %p377, %p378
    %p380 = scmp.ne.s32.totalorder %s372, %s374
    %p381 = scmp.eq.s32.totalorder %s28, 1
    %p382 = por %p380, %p381
    %p383 = scmp.ne.s32.totalorder %s374, %s375
    %p384 = scmp.eq.s32.totalorder %s28, 0
    %p385 = por %p383, %p384
    %p386 = scmp.ne.s32.totalorder %s374, %s375
    %p387 = scmp.eq.s32.totalorder %s29, 1
    %p388 = por %p386, %p387
    %p390 = scmp.ne.s32.totalorder %s375, %s389
    %p391 = scmp.eq.s32.totalorder %s29, 0
    %p392 = por %p390, %p391
    %s393 = ssub.s32 %s23, %s30
    %p394 = scmp.eq.s32.totalorder %s393, 0
    %s396 = sadd.s32 %s395, 1
    %s397 = scalar_select %p394, %s395, %s396
    %p400 = pneg %p394
    %p401 = scmp.eq.s32.totalorder %s23, 1
    %p402 = por %p400, %p401
    %p403 = scmp.ne.s32.totalorder %s395, %s398
    %p404 = scmp.eq.s32.totalorder %s23, 0
    %p405 = por %p403, %p404
    %p406 = scmp.ne.s32.totalorder %s395, %s398
    %p407 = scmp.eq.s32.totalorder %s28, 1
    %p408 = por %p406, %p407
    %p409 = scmp.ne.s32.totalorder %s398, %s399
    %p410 = scmp.eq.s32.totalorder %s28, 0
    %p411 = por %p409, %p410
    %p412 = scmp.ne.s32.totalorder %s398, %s399
    %p413 = scmp.eq.s32.totalorder %s29, 1
    %p414 = por %p412, %p413
    %p416 = scmp.ne.s32.totalorder %s399, %s415
    %p417 = scmp.eq.s32.totalorder %s29, 0
    %p418 = por %p416, %p417
    %p419 = scmp.le.s32.totalorder 1, %s23
    %p420 = scmp.lt.s32.totalorder %s23, 3
    %p421 = pnand %p419, %p420
    %p422 = pneg %p421
    // Predicated region
    $region9: #{time_series_gpt_forward.1} parent=5 // pred_check
      _
    $region10: #{time_series_gpt_forward.1} parent=5 // pred_check_branch
      %424 = sbr.rel (%p421) target = $region12
    $region11: #{time_series_gpt_forward.1} parent=5 // pred_region
      %s425 = ssub.s32 %s23, 1
      // Predicated region
      $region13: #{time_series_gpt_forward.1} parent=11 // pred_check
        %p426 = pneg %p70
      $region14: #{time_series_gpt_forward.1} parent=11 // pred_check_branch
        %428 = sbr.rel (%p426) target = $region16
      $region15: #{time_series_gpt_forward.1} parent=11 // pred_region
        _
      $region16: #{time_series_gpt_forward.1} parent=11 // pred_fallthru
        _
      // Predicated region
      $region17: #{time_series_gpt_forward.1} parent=11 // pred_check
        %p429 = pneg %p91
      $region18: #{time_series_gpt_forward.1} parent=11 // pred_check_branch
        %431 = sbr.rel (%p429) target = $region20
      $region19: #{time_series_gpt_forward.1} parent=11 // pred_region
        _
      $region20: #{time_series_gpt_forward.1} parent=11 // pred_fallthru
        _
      // Predicated region
      $region21: #{time_series_gpt_forward.1} parent=11 // pred_check
        %p432 = pneg %p112
      $region22: #{time_series_gpt_forward.1} parent=11 // pred_check_branch
        %434 = sbr.rel (%p432) target = $region24
      $region23: #{time_series_gpt_forward.1} parent=11 // pred_region
        _
      $region24: #{time_series_gpt_forward.1} parent=11 // pred_fallthru
        _
      // Predicated region
      $region25: #{time_series_gpt_forward.1} parent=11 // pred_check
        %p435 = pneg %p133
      $region26: #{time_series_gpt_forward.1} parent=11 // pred_check_branch
        %437 = sbr.rel (%p435) target = $region28
      $region27: #{time_series_gpt_forward.1} parent=11 // pred_region
        _
      $region28: #{time_series_gpt_forward.1} parent=11 // pred_fallthru
        _
      // Predicated region
      $region29: #{time_series_gpt_forward.1} parent=11 // pred_check
        %p438 = pneg %p154
      $region30: #{time_series_gpt_forward.1} parent=11 // pred_check_branch
        %440 = sbr.rel (%p438) target = $region32
      $region31: #{time_series_gpt_forward.1} parent=11 // pred_region
        _
      $region32: #{time_series_gpt_forward.1} parent=11 // pred_fallthru
        _
      // Predicated region
      $region33: #{time_series_gpt_forward.1} parent=11 // pred_check
        %p441 = pneg %p175
      $region34: #{time_series_gpt_forward.1} parent=11 // pred_check_branch
        %443 = sbr.rel (%p441) target = $region36
      $region35: #{time_series_gpt_forward.1} parent=11 // pred_region
        _
      $region36: #{time_series_gpt_forward.1} parent=11 // pred_fallthru
        _
      // Predicated region
      $region37: #{time_series_gpt_forward.1} parent=11 // pred_check
        %p444 = pneg %p196
      $region38: #{time_series_gpt_forward.1} parent=11 // pred_check_branch
        %446 = sbr.rel (%p444) target = $region40
      $region39: #{time_series_gpt_forward.1} parent=11 // pred_region
        _
      $region40: #{time_series_gpt_forward.1} parent=11 // pred_fallthru
        _
      // Predicated region
      $region41: #{time_series_gpt_forward.1} parent=11 // pred_check
        %p447 = pneg %p217
      $region42: #{time_series_gpt_forward.1} parent=11 // pred_check_branch
        %449 = sbr.rel (%p447) target = $region44
      $region43: #{time_series_gpt_forward.1} parent=11 // pred_region
        _
      $region44: #{time_series_gpt_forward.1} parent=11 // pred_fallthru
        _
      // Predicated region
      $region45: #{time_series_gpt_forward.1} parent=11 // pred_check
        %p450 = pneg %p238
      $region46: #{time_series_gpt_forward.1} parent=11 // pred_check_branch
        %452 = sbr.rel (%p450) target = $region48
      $region47: #{time_series_gpt_forward.1} parent=11 // pred_region
        _
      $region48: #{time_series_gpt_forward.1} parent=11 // pred_fallthru
        _
      // Predicated region
      $region49: #{time_series_gpt_forward.1} parent=11 // pred_check
        %p453 = pneg %p259
      $region50: #{time_series_gpt_forward.1} parent=11 // pred_check_branch
        %455 = sbr.rel (%p453) target = $region52
      $region51: #{time_series_gpt_forward.1} parent=11 // pred_region
        _
      $region52: #{time_series_gpt_forward.1} parent=11 // pred_fallthru
        _
      // Predicated region
      $region53: #{time_series_gpt_forward.1} parent=11 // pred_check
        %p456 = pneg %p280
      $region54: #{time_series_gpt_forward.1} parent=11 // pred_check_branch
        %458 = sbr.rel (%p456) target = $region56
      $region55: #{time_series_gpt_forward.1} parent=11 // pred_region
        _
      $region56: #{time_series_gpt_forward.1} parent=11 // pred_fallthru
        _
      // Predicated region
      $region57: #{time_series_gpt_forward.1} parent=11 // pred_check
        %p459 = pneg %p301
      $region58: #{time_series_gpt_forward.1} parent=11 // pred_check_branch
        %461 = sbr.rel (%p459) target = $region60
      $region59: #{time_series_gpt_forward.1} parent=11 // pred_region
        _
      $region60: #{time_series_gpt_forward.1} parent=11 // pred_fallthru
        _
      // Predicated region
      $region61: #{time_series_gpt_forward.1} parent=11 // pred_check
        %p462 = pneg %p322
      $region62: #{time_series_gpt_forward.1} parent=11 // pred_check_branch
        %464 = sbr.rel (%p462) target = $region64
      $region63: #{time_series_gpt_forward.1} parent=11 // pred_region
        _
      $region64: #{time_series_gpt_forward.1} parent=11 // pred_fallthru
        _
      // Predicated region
      $region65: #{time_series_gpt_forward.1} parent=11 // pred_check
        %p465 = pneg %p343
      $region66: #{time_series_gpt_forward.1} parent=11 // pred_check_branch
        %467 = sbr.rel (%p465) target = $region68
      $region67: #{time_series_gpt_forward.1} parent=11 // pred_region
        _
      $region68: #{time_series_gpt_forward.1} parent=11 // pred_fallthru
        _
      // Predicated region
      $region69: #{time_series_gpt_forward.1} parent=11 // pred_check
        %p468 = pneg %p364
      $region70: #{time_series_gpt_forward.1} parent=11 // pred_check_branch
        %470 = sbr.rel (%p468) target = $region72
      $region71: #{time_series_gpt_forward.1} parent=11 // pred_region
        _
      $region72: #{time_series_gpt_forward.1} parent=11 // pred_fallthru
        _
      // Predicated region
      $region73: #{time_series_gpt_forward.1} parent=11 // pred_check
        %p471 = pneg %p385
      $region74: #{time_series_gpt_forward.1} parent=11 // pred_check_branch
        %473 = sbr.rel (%p471) target = $region76
      $region75: #{time_series_gpt_forward.1} parent=11 // pred_region
        _
      $region76: #{time_series_gpt_forward.1} parent=11 // pred_fallthru
        _
    $region12: #{time_series_gpt_forward.1} parent=5 // pred_fallthru
      _
    %p474 = scmp.lt.s32.totalorder %s23, 2
    // Predicated region
    $region77: #{time_series_gpt_forward.1} parent=5 // pred_check
      %p475 = pneg %p474
    $region78: #{time_series_gpt_forward.1} parent=5 // pred_check_branch
      %477 = sbr.rel (%p475) target = $region80
    $region79: #{time_series_gpt_forward.1} parent=5 // pred_region
      // Predicated region
      $region81: #{time_series_gpt_forward.1} parent=79 // pred_check
        %p478 = pneg %p43
      $region82: #{time_series_gpt_forward.1} parent=79 // pred_check_branch
        %480 = sbr.rel (%p478) target = $region84
      $region83: #{time_series_gpt_forward.1} parent=79 // pred_region
        %p481 = scmp.lt.s32.totalorder %s23, 1
        %s482 = scalar_select %p481, %s23, 1
        %s483 = scalar_lea.vmem %s0, %s482
      $region84: #{time_series_gpt_forward.1} parent=79 // pred_fallthru
        _
    $region80: #{time_series_gpt_forward.1} parent=5 // pred_fallthru
      _
    %p484 = scmp.le.s32.totalorder 1, %s23
    %p485 = scmp.lt.s32.totalorder %s23, 3
    %p486 = pnand %p484, %p485
    %p487 = pneg %p486
    // Predicated region
    $region85: #{time_series_gpt_forward.1} parent=5 // pred_check
      _
    $region86: #{time_series_gpt_forward.1} parent=5 // pred_check_branch
      %489 = sbr.rel (%p486) target = $region88
    $region87: #{time_series_gpt_forward.1} parent=5 // pred_region
      %s490 = ssub.s32 %s23, 1
      %p491 = scmp.lt.s32.totalorder %s28, 1
      %s492 = scalar_select %p491, %s28, 1
      %s493 = scalar_lea.vmem %s0, %s492
      %p494 = pneg %p49
      %p495 = pneg %p46
      %p496 = pneg %p70
      %p497 = pneg %p67
      %p498 = pneg %p91
      %p499 = pneg %p88
      %p500 = pneg %p112
      %p501 = pneg %p109
      %p502 = pneg %p133
      %p503 = pneg %p130
      %p504 = pneg %p154
      %p505 = pneg %p151
      %p506 = pneg %p175
      %p507 = pneg %p172
      %p508 = pneg %p196
      %p509 = pneg %p193
      %p510 = pneg %p217
      %p511 = pneg %p214
      %p512 = pneg %p238
      %p513 = pneg %p235
      %p514 = pneg %p259
      %p515 = pneg %p256
      %p516 = pneg %p280
      %p517 = pneg %p277
      %p518 = pneg %p301
      %p519 = pneg %p298
      %p520 = pneg %p322
      %p521 = pneg %p319
      %p522 = pneg %p343
      %p523 = pneg %p340
      %p524 = pneg %p364
      %p525 = pneg %p361
      %p526 = pneg %p385
      %p527 = pneg %p382
      %p528 = pneg %p411
      %p529 = pneg %p408
      %p530 = scmp.lt.s32.totalorder %s28, 1
      %s531 = scalar_select %p530, %s28, 1
      %s532 = smul.addr %s531, 8
      %s533 = scalar_lea.vmem %s17, %s532
      %p534 = scmp.lt.s32.totalorder %s28, 1
      %s535 = scalar_select %p534, %s28, 1
      %s536 = scalar_lea.vmem %s0, %s535
      %p537 = scmp.lt.s32.totalorder %s28, 1
      %s538 = scalar_select %p537, %s28, 1
      %s539 = smul.addr %s538, 8
      %s540 = scalar_lea.vmem %s17, %s539
      %vm541 = vcmask 261120
      %542 = vst.msk [vmem:[#allocation2] sm:$0xff] %vm541, 0.0
      %vm543 = vcmask 259072
      %544 = vst.msk [vmem:[#allocation2 + $0x8] sm:$0x3f] %vm543, 0.0
      %545 = vst.msk [vmem:[#allocation3] sm:$0xff] %vm541, 0.0
      %546 = vst.msk [vmem:[#allocation3 + $0x8] sm:$0x3f] %vm543, 0.0
      %v547 = vld [vmem:[%s536] sm:$0x1]
      %vm548 = vcmask 24576
      %549 = vst.msk [vmem:[#allocation4] sm:$0x1] %vm548, %v547
      %v550 = vlaneseq
      %v551 = vshrl.u32 %v550, 7
      %v552 = vadd.s32 %v551, 8
      %v553 = vadd.s32 %v551, 16
      %v554 = vadd.s32 %v551, 24
      %v555 = vlaneseq
      %v556 = vand.u32 %v555, 127
      %v557 = vmul.u32 %v556, 8
      %vm558 = vcmp.ge.s32.totalorder %v551, %v557
      %vm559 = vcmp.ge.s32.totalorder %v552, %v557
      %vm560 = vcmp.ge.s32.totalorder %v553, %v557
      %vm561 = vcmp.ge.s32.totalorder %v554, %v557
      %v562 = vadd.s32 %v556, 1
      %v563 = vmul.u32 %v562, 8
      %vm564 = vcmp.lt.s32.totalorder %v551, %v563
      %vm565 = vcmp.lt.s32.totalorder %v552, %v563
      %vm566 = vcmp.lt.s32.totalorder %v553, %v563
      %vm567 = vcmp.lt.s32.totalorder %v554, %v563
      %vm568 = vmand %vm558, %vm564
      %vm569 = vmand %vm559, %vm565
      %vm570 = vmand %vm560, %vm566
      %vm571 = vmand %vm561, %vm567
      %v572 = vsel %vm568, 1.0, 0.0
      %v573 = vsel %vm569, 1.0, 0.0
      %v574 = vsel %vm570, 1.0, 0.0
      %v575 = vsel %vm571, 1.0, 0.0
      loop: start=0, step=1, limit=7
      $region89: #{time_series_gpt_forward.1} parent=87 // loop_pre_header
        _
      $region90: #{time_series_gpt_forward.1} parent=87 // loop_header
        %s577 = sphi 0, %s581
        %p578 = scmp.ge.s32.totalorder %s577, 7
      $region91: #{time_series_gpt_forward.1} parent=87 // loop_header_branch
        %580 = sbr.rel (%p578) target = $region95
      $region92: #{time_series_gpt_forward.1} parent=87 // loop_body
        %v582 = vld [vmem:[#allocation4] sm:$0x1]
        %v583 = vld [vmem:[%s1] sm:$0xff]
        %v584 = vld [vmem:[%s1 + $0x8] sm:$0xff]
        %v585 = vld [vmem:[%s1 + $0x10] sm:$0xff]
        %v586 = vld [vmem:[%s1 + $0x18] sm:$0xff]
        %v587 = vld [vmem:[%s2] sm:$0x1]
        %vm588 = vcmask 31744
        %v590 = vsel %vm588, %v582, 0
        %v593 = vsel %vm588, %v583, 0
        %v596 = vsel %vm588, %v584, 0
        %v599 = vsel %vm588, %v585, 0
        %v602 = vsel %vm588, %v586, 0
        %604 = vmatprep.subr.mxu0 0.0
        %605 = vmatpush1.xpose.msra.mxu0 %v593
        %606 = vmatprep.subr.mxu0 0.0
        %607 = vmatpush1.xpose.msra.mxu0 %v596
        %608 = vmatprep.subr.mxu0 0.0
        %609 = vmatpush1.xpose.msra.mxu0 %v599
        %610 = vmatprep.subr.mxu0 0.0
        %611 = vmatpush1.xpose.msra.mxu0 %v602
        %612 = vmatprep.subr.mxu0 0.0
        %613 = vmatpush1.xpose.msra.mxu0 0.0
        %614 = vmatprep.subr.mxu0 0.0
        %615 = vmatpush1.xpose.msra.mxu0 0.0
        %616 = vmatprep.subr.mxu0 0.0
        %617 = vmatpush1.xpose.msra.mxu0 0.0
        %618 = vmatprep.subr.mxu0 0.0
        %619 = vmatpush1.xpose.msra.mxu0 0.0
        %620 = vmatprep.subr.mxu0 0.0
        %621 = vmatpush1.xpose.msra.mxu0 0.0
        %622 = vmatprep.subr.mxu0 0.0
        %623 = vmatpush1.xpose.msra.mxu0 0.0
        %624 = vmatprep.subr.mxu0 0.0
        %625 = vmatpush1.xpose.msra.mxu0 0.0
        %626 = vmatprep.subr.mxu0 0.0
        %627 = vmatpush1.xpose.msra.mxu0 0.0
        %628 = vmatprep.subr.mxu0 0.0
        %629 = vmatpush1.xpose.msra.mxu0 0.0
        %630 = vmatprep.subr.mxu0 0.0
        %631 = vmatpush1.xpose.msra.mxu0 0.0
        %632 = vmatprep.subr.mxu0 0.0
        %633 = vmatpush1.xpose.msra.mxu0 0.0
        %634 = vmatprep.subr.mxu0 0.0
        %635 = vmatpush1.xpose.msra.mxu0 0.0
        %636 = vmatprep.subr.mxu0 0.0
        %637 = vmatpush1.xpose.msra.mxu0 0.0
        %638 = vmatprep.subr.mxu0 0.0
        %639 = vmatpush1.xpose.msra.mxu0 0.0
        %640 = vmatprep.subr.mxu0 0.0
        %641 = vmatpush1.xpose.msra.mxu0 0.0
        %642 = vmatprep.subr.mxu0 0.0
        %643 = vmatpush1.xpose.msra.mxu0 0.0
        %644 = vmatprep.subr.mxu0 0.0
        %645 = vmatpush1.xpose.msra.mxu0 0.0
        %646 = vmatprep.subr.mxu0 0.0
        %647 = vmatpush1.xpose.msra.mxu0 0.0
        %648 = vmatprep.subr.mxu0 0.0
        %649 = vmatpush1.xpose.msra.mxu0 0.0
        %650 = vmatprep.subr.mxu0 0.0
        %651 = vmatpush1.xpose.msra.mxu0 0.0
        %652 = vmatprep.subr.mxu0 0.0
        %653 = vmatpush1.xpose.msra.mxu0 0.0
        %654 = vmatprep.subr.mxu0 0.0
        %655 = vmatpush1.xpose.msra.mxu0 0.0
        %656 = vmatprep.subr.mxu0 0.0
        %657 = vmatpush1.xpose.msra.mxu0 0.0
        %658 = vmatprep.subr.mxu0 0.0
        %659 = vmatpush1.xpose.msra.mxu0 0.0
        %660 = vmatprep.subr.mxu0 0.0
        %661 = vmatpush1.xpose.msra.mxu0 0.0
        %662 = vmatprep.subr.mxu0 0.0
        %663 = vmatpush1.xpose.msra.mxu0 0.0
        %664 = vmatprep.subr.mxu0 0.0
        %665 = vmatpush1.xpose.msra.mxu0 0.0
        %666 = vmatprep.subr.mxu0 0.0
        %667 = vmatpush1.xpose.msra.mxu0 0.0
        %668 = vmatprep.mubr.f32.mxu0 0.0
        %669 = vmatmul.mubr.f32.gmra.mrb[0].mxu0 %v590
        %v670 = vpop.f32.mrb[0].mxu0
        %v671 = vadd.f32 %v587, %v670
        %v672 = vpop.f32.mrb[0].mxu0
        %673 = vdwg.mxu0
        %v674 = vld [vmem:[%s3] sm:$0xff]
        %v675 = vld [vmem:[%s3 + $0x8] sm:$0xff]
        %v676 = vld [vmem:[%s3 + $0x10] sm:$0xff]
        %v677 = vld [vmem:[%s3 + $0x18] sm:$0xff]
        %v678 = vld [vmem:[%s3 + $0x20] sm:$0xff]
        %v679 = vld [vmem:[%s3 + $0x28] sm:$0xff]
        %v680 = vld [vmem:[%s3 + $0x30] sm:$0xff]
        %v681 = vld [vmem:[%s3 + $0x38] sm:$0xff]
        %v682 = vld [vmem:[%s3 + $0x40] sm:$0xff]
        %v683 = vld [vmem:[%s3 + $0x48] sm:$0xff]
        %v684 = vld [vmem:[%s3 + $0x50] sm:$0xff]
        %v685 = vld [vmem:[%s3 + $0x58] sm:$0xff]
        %v686 = vld [vmem:[%s4] sm:$0x1]
        %v688 = vsel %vm541, %v671, 0
        %v691 = vsel %vm541, %v674, 0
        %v694 = vsel %vm541, %v675, 0
        %v697 = vsel %vm541, %v676, 0
        %v700 = vsel %vm541, %v677, 0
        %v703 = vsel %vm541, %v678, 0
        %v706 = vsel %vm541, %v679, 0
        %v709 = vsel %vm541, %v680, 0
        %v712 = vsel %vm541, %v681, 0
        %v715 = vsel %vm541, %v682, 0
        %v718 = vsel %vm541, %v683, 0
        %v721 = vsel %vm541, %v684, 0
        %v724 = vsel %vm541, %v685, 0
        %726 = vmatprep.subr.mxu0 0.0
        %727 = vmatpush1.xpose.msra.mxu0 %v691
        %728 = vmatprep.subr.mxu0 0.0
        %729 = vmatpush1.xpose.msra.mxu0 %v694
        %730 = vmatprep.subr.mxu0 0.0
        %731 = vmatpush1.xpose.msra.mxu0 %v697
        %732 = vmatprep.subr.mxu0 0.0
        %733 = vmatpush1.xpose.msra.mxu0 %v700
        %734 = vmatprep.subr.mxu0 0.0
        %735 = vmatpush1.xpose.msra.mxu0 %v703
        %736 = vmatprep.subr.mxu0 0.0
        %737 = vmatpush1.xpose.msra.mxu0 %v706
        %738 = vmatprep.subr.mxu0 0.0
        %739 = vmatpush1.xpose.msra.mxu0 %v709
        %740 = vmatprep.subr.mxu0 0.0
        %741 = vmatpush1.xpose.msra.mxu0 %v712
        %742 = vmatprep.subr.mxu0 0.0
        %743 = vmatpush1.xpose.msra.mxu0 %v715
        %744 = vmatprep.subr.mxu0 0.0
        %745 = vmatpush1.xpose.msra.mxu0 %v718
        %746 = vmatprep.subr.mxu0 0.0
        %747 = vmatpush1.xpose.msra.mxu0 %v721
        %748 = vmatprep.subr.mxu0 0.0
        %749 = vmatpush1.xpose.msra.mxu0 %v724
        %750 = vmatprep.subr.mxu0 0.0
        %751 = vmatpush1.xpose.msra.mxu0 0.0
        %752 = vmatprep.subr.mxu0 0.0
        %753 = vmatpush1.xpose.msra.mxu0 0.0
        %754 = vmatprep.subr.mxu0 0.0
        %755 = vmatpush1.xpose.msra.mxu0 0.0
        %756 = vmatprep.subr.mxu0 0.0
        %757 = vmatpush1.xpose.msra.mxu0 0.0
        %758 = vmatprep.subr.mxu0 0.0
        %759 = vmatpush1.xpose.msra.mxu0 0.0
        %760 = vmatprep.subr.mxu0 0.0
        %761 = vmatpush1.xpose.msra.mxu0 0.0
        %762 = vmatprep.subr.mxu0 0.0
        %763 = vmatpush1.xpose.msra.mxu0 0.0
        %764 = vmatprep.subr.mxu0 0.0
        %765 = vmatpush1.xpose.msra.mxu0 0.0
        %766 = vmatprep.subr.mxu0 0.0
        %767 = vmatpush1.xpose.msra.mxu0 0.0
        %768 = vmatprep.subr.mxu0 0.0
        %769 = vmatpush1.xpose.msra.mxu0 0.0
        %770 = vmatprep.subr.mxu0 0.0
        %771 = vmatpush1.xpose.msra.mxu0 0.0
        %772 = vmatprep.subr.mxu0 0.0
        %773 = vmatpush1.xpose.msra.mxu0 0.0
        %774 = vmatprep.subr.mxu0 0.0
        %775 = vmatpush1.xpose.msra.mxu0 0.0
        %776 = vmatprep.subr.mxu0 0.0
        %777 = vmatpush1.xpose.msra.mxu0 0.0
        %778 = vmatprep.subr.mxu0 0.0
        %779 = vmatpush1.xpose.msra.mxu0 0.0
        %780 = vmatprep.subr.mxu0 0.0
        %781 = vmatpush1.xpose.msra.mxu0 0.0
        %782 = vmatprep.subr.mxu0 0.0
        %783 = vmatpush1.xpose.msra.mxu0 0.0
        %784 = vmatprep.subr.mxu0 0.0
        %785 = vmatpush1.xpose.msra.mxu0 0.0
        %786 = vmatprep.subr.mxu0 0.0
        %787 = vmatpush1.xpose.msra.mxu0 0.0
        %788 = vmatprep.subr.mxu0 0.0
        %789 = vmatpush1.xpose.msra.mxu0 0.0
        %790 = vmatprep.mubr.f32.mxu0 0.0
        %791 = vmatmul.mubr.f32.gmra.mrb[0].mxu0 %v688
        %v792 = vpop.f32.mrb[0].mxu0
        %v793 = vadd.f32 %v686, %v792
        %v794 = vpop.f32.mrb[0].mxu0
        %795 = vdwg.mxu0
        %797 = vrot.lane.b32.xlu0 %v793, 96
        %v798 = vpop.permute.xlu0 %797
        %s800 = scalar_lea.vmem [#allocation2], %s577
        %vm801 = vcmask 253952
        %802 = vst.msk [vmem:[%s800] sm:$0x1] %vm801, %v798
        %803 = vrot.lane.b32.xlu0 %v793, 64
        %v804 = vpop.permute.xlu0 %803
        %s806 = scalar_lea.vmem [#allocation3], %s577
        %807 = vst.msk [vmem:[%s806] sm:$0x1] %vm801, %v804
        %v808 = vld [vmem:[#allocation2] sm:$0x7f]
        %v809 = vld [vmem:[#allocation3] sm:$0x7f]
        %v810 = vlaneseq
        %v811 = vshrl.u32 %v810, 7
        %v812 = vsub.s32 0, %v811
        %v813 = vrot.slane %v793, %v812
        %v814 = vmul.f32 %v813, %v808
        %v816 = vsel %vm541, %v814, 0
        %818 = vmatprep.subr.mxu0 0.0
        %819 = vmatpush1.msra.mxu0 %v572
        %820 = vmatprep.subr.mxu0 0.0
        %821 = vmatpush1.msra.mxu0 %v573
        %822 = vmatprep.subr.mxu0 0.0
        %823 = vmatpush1.msra.mxu0 %v574
        %824 = vmatprep.subr.mxu0 0.0
        %825 = vmatpush1.msra.mxu0 %v575
        %826 = vmatprep.subr.mxu0 0.0
        %827 = vmatpush1.msra.mxu0 0.0
        %828 = vmatprep.subr.mxu0 0.0
        %829 = vmatpush1.msra.mxu0 0.0
        %830 = vmatprep.subr.mxu0 0.0
        %831 = vmatpush1.msra.mxu0 0.0
        %832 = vmatprep.subr.mxu0 0.0
        %833 = vmatpush1.msra.mxu0 0.0
        %834 = vmatprep.subr.mxu0 0.0
        %835 = vmatpush1.msra.mxu0 0.0
        %836 = vmatprep.subr.mxu0 0.0
        %837 = vmatpush1.msra.mxu0 0.0
        %838 = vmatprep.subr.mxu0 0.0
        %839 = vmatpush1.msra.mxu0 0.0
        %840 = vmatprep.subr.mxu0 0.0
        %841 = vmatpush1.msra.mxu0 0.0
        %842 = vmatprep.subr.mxu0 0.0
        %843 = vmatpush1.msra.mxu0 0.0
        %844 = vmatprep.subr.mxu0 0.0
        %845 = vmatpush1.msra.mxu0 0.0
        %846 = vmatprep.subr.mxu0 0.0
        %847 = vmatpush1.msra.mxu0 0.0
        %848 = vmatprep.subr.mxu0 0.0
        %849 = vmatpush1.msra.mxu0 0.0
        %850 = vmatprep.subr.mxu0 0.0
        %851 = vmatpush1.msra.mxu0 0.0
        %852 = vmatprep.subr.mxu0 0.0
        %853 = vmatpush1.msra.mxu0 0.0
        %854 = vmatprep.subr.mxu0 0.0
        %855 = vmatpush1.msra.mxu0 0.0
        %856 = vmatprep.subr.mxu0 0.0
        %857 = vmatpush1.msra.mxu0 0.0
        %858 = vmatprep.subr.mxu0 0.0
        %859 = vmatpush1.msra.mxu0 0.0
        %860 = vmatprep.subr.mxu0 0.0
        %861 = vmatpush1.msra.mxu0 0.0
        %862 = vmatprep.subr.mxu0 0.0
        %863 = vmatpush1.msra.mxu0 0.0
        %864 = vmatprep.subr.mxu0 0.0
        %865 = vmatpush1.msra.mxu0 0.0
        %866 = vmatprep.subr.mxu0 0.0
        %867 = vmatpush1.msra.mxu0 0.0
        %868 = vmatprep.subr.mxu0 0.0
        %869 = vmatpush1.msra.mxu0 0.0
        %870 = vmatprep.subr.mxu0 0.0
        %871 = vmatpush1.msra.mxu0 0.0
        %872 = vmatprep.subr.mxu0 0.0
        %873 = vmatpush1.msra.mxu0 0.0
        %874 = vmatprep.subr.mxu0 0.0
        %875 = vmatpush1.msra.mxu0 0.0
        %876 = vmatprep.subr.mxu0 0.0
        %877 = vmatpush1.msra.mxu0 0.0
        %878 = vmatprep.subr.mxu0 0.0
        %879 = vmatpush1.msra.mxu0 0.0
        %880 = vmatprep.subr.mxu0 0.0
        %881 = vmatpush1.msra.mxu0 0.0
        %882 = vmatprep.mubr.f32.mxu0 0.0
        %883 = vmatmul.mubr.f32.gmra.mrb[0].mxu0 %v816
        %v884 = vpop.f32.mrb[0].mxu0
        %v885 = vadd.f32 0.0, %v884
        %v886 = vpop.f32.mrb[0].mxu0
        %887 = vdwg.mxu0
        %v888 = vmul.f32 %v885, 0.35355338
        %v889 = vstv %s577
        %vm890 = vcmp.le.s32.totalorder %v551, %v889
        %v891 = vsel %vm890, %v888, -1e+30
        %vm892 = vcmask 30720
        %v893 = vsel %vm892, %v891, -inf
        %v894 = vrot.slane %v893, 4
        %v895 = vmax.f32 %v893, %v894
        %v896 = vrot.slane %v895, 2
        %v897 = vmax.f32 %v895, %v896
        %v898 = vrot.slane %v897, 1
        %v899 = vmax.f32 %v897, %v898
        %v900 = vsub.f32 %v891, %v899
        %v901 = vmul.f32 %v900, 1.442695
        %v902 = vpow.pop %v901
        %v903 = vsel %vm892, %v902, 0.0
        %v904 = vrot.slane %v903, 4
        %v905 = vadd.f32 %v903, %v904
        %v906 = vrot.slane %v905, 2
        %v907 = vadd.f32 %v905, %v906
        %v908 = vrot.slane %v907, 1
        %v909 = vadd.f32 %v907, %v908
        %v910 = vrcp.pop %v909
        %v911 = vmul.f32 %v902, %v910
        %v913 = vsel %vm588, %v911, 0
        %v916 = vsel %vm588, %v572, 0
        %v919 = vsel %vm588, %v573, 0
        %v922 = vsel %vm588, %v574, 0
        %v925 = vsel %vm588, %v575, 0
        %927 = vmatprep.subr.mxu0 0.0
        %928 = vmatpush1.xpose.msra.mxu0 %v916
        %929 = vmatprep.subr.mxu0 0.0
        %930 = vmatpush1.xpose.msra.mxu0 %v919
        %931 = vmatprep.subr.mxu0 0.0
        %932 = vmatpush1.xpose.msra.mxu0 %v922
        %933 = vmatprep.subr.mxu0 0.0
        %934 = vmatpush1.xpose.msra.mxu0 %v925
        %935 = vmatprep.subr.mxu0 0.0
        %936 = vmatpush1.xpose.msra.mxu0 0.0
        %937 = vmatprep.subr.mxu0 0.0
        %938 = vmatpush1.xpose.msra.mxu0 0.0
        %939 = vmatprep.subr.mxu0 0.0
        %940 = vmatpush1.xpose.msra.mxu0 0.0
        %941 = vmatprep.subr.mxu0 0.0
        %942 = vmatpush1.xpose.msra.mxu0 0.0
        %943 = vmatprep.subr.mxu0 0.0
        %944 = vmatpush1.xpose.msra.mxu0 0.0
        %945 = vmatprep.subr.mxu0 0.0
        %946 = vmatpush1.xpose.msra.mxu0 0.0
        %947 = vmatprep.subr.mxu0 0.0
        %948 = vmatpush1.xpose.msra.mxu0 0.0
        %949 = vmatprep.subr.mxu0 0.0
        %950 = vmatpush1.xpose.msra.mxu0 0.0
        %951 = vmatprep.subr.mxu0 0.0
        %952 = vmatpush1.xpose.msra.mxu0 0.0
        %953 = vmatprep.subr.mxu0 0.0
        %954 = vmatpush1.xpose.msra.mxu0 0.0
        %955 = vmatprep.subr.mxu0 0.0
        %956 = vmatpush1.xpose.msra.mxu0 0.0
        %957 = vmatprep.subr.mxu0 0.0
        %958 = vmatpush1.xpose.msra.mxu0 0.0
        %959 = vmatprep.subr.mxu0 0.0
        %960 = vmatpush1.xpose.msra.mxu0 0.0
        %961 = vmatprep.subr.mxu0 0.0
        %962 = vmatpush1.xpose.msra.mxu0 0.0
        %963 = vmatprep.subr.mxu0 0.0
        %964 = vmatpush1.xpose.msra.mxu0 0.0
        %965 = vmatprep.subr.mxu0 0.0
        %966 = vmatpush1.xpose.msra.mxu0 0.0
        %967 = vmatprep.subr.mxu0 0.0
        %968 = vmatpush1.xpose.msra.mxu0 0.0
        %969 = vmatprep.subr.mxu0 0.0
        %970 = vmatpush1.xpose.msra.mxu0 0.0
        %971 = vmatprep.subr.mxu0 0.0
        %972 = vmatpush1.xpose.msra.mxu0 0.0
        %973 = vmatprep.subr.mxu0 0.0
        %974 = vmatpush1.xpose.msra.mxu0 0.0
        %975 = vmatprep.subr.mxu0 0.0
        %976 = vmatpush1.xpose.msra.mxu0 0.0
        %977 = vmatprep.subr.mxu0 0.0
        %978 = vmatpush1.xpose.msra.mxu0 0.0
        %979 = vmatprep.subr.mxu0 0.0
        %980 = vmatpush1.xpose.msra.mxu0 0.0
        %981 = vmatprep.subr.mxu0 0.0
        %982 = vmatpush1.xpose.msra.mxu0 0.0
        %983 = vmatprep.subr.mxu0 0.0
        %984 = vmatpush1.xpose.msra.mxu0 0.0
        %985 = vmatprep.subr.mxu0 0.0
        %986 = vmatpush1.xpose.msra.mxu0 0.0
        %987 = vmatprep.subr.mxu0 0.0
        %988 = vmatpush1.xpose.msra.mxu0 0.0
        %989 = vmatprep.subr.mxu0 0.0
        %990 = vmatpush1.xpose.msra.mxu0 0.0
        %991 = vmatprep.mubr.f32.mxu0 0.0
        %992 = vmatmul.mubr.f32.gmra.mrb[0].mxu0 %v913
        %v993 = vpop.f32.mrb[0].mxu0
        %v994 = vadd.f32 0.0, %v993
        %v995 = vpop.f32.mrb[0].mxu0
        %996 = vdwg.mxu0
        %v997 = vmul.f32 %v994, %v809
        %vm998 = vcmask 260096
        %v999 = vsel %vm998, %v997, 0.0
        %v1000 = vrot.slane %v999, 4
        %v1001 = vadd.f32 %v999, %v1000
        %v1002 = vrot.slane %v1001, 2
        %v1003 = vadd.f32 %v1001, %v1002
        %v1004 = vrot.slane %v1003, 1
        %v1005 = vadd.f32 %v1003, %v1004
        %v1006 = vld [vmem:[%s5] sm:$0xff]
        %v1007 = vld [vmem:[%s5 + $0x8] sm:$0xff]
        %v1008 = vld [vmem:[%s5 + $0x10] sm:$0xff]
        %v1009 = vld [vmem:[%s5 + $0x18] sm:$0xff]
        %v1010 = vld [vmem:[%s6] sm:$0x1]
        %v1012 = vsel %vm541, %v1005, 0
        %v1015 = vsel %vm541, %v1006, 0
        %v1018 = vsel %vm541, %v1007, 0
        %v1021 = vsel %vm541, %v1008, 0
        %v1024 = vsel %vm541, %v1009, 0
        %1026 = vmatprep.subr.mxu0 0.0
        %1027 = vmatpush1.xpose.msra.mxu0 %v1015
        %1028 = vmatprep.subr.mxu0 0.0
        %1029 = vmatpush1.xpose.msra.mxu0 %v1018
        %1030 = vmatprep.subr.mxu0 0.0
        %1031 = vmatpush1.xpose.msra.mxu0 %v1021
        %1032 = vmatprep.subr.mxu0 0.0
        %1033 = vmatpush1.xpose.msra.mxu0 %v1024
        %1034 = vmatprep.subr.mxu0 0.0
        %1035 = vmatpush1.xpose.msra.mxu0 0.0
        %1036 = vmatprep.subr.mxu0 0.0
        %1037 = vmatpush1.xpose.msra.mxu0 0.0
        %1038 = vmatprep.subr.mxu0 0.0
        %1039 = vmatpush1.xpose.msra.mxu0 0.0
        %1040 = vmatprep.subr.mxu0 0.0
        %1041 = vmatpush1.xpose.msra.mxu0 0.0
        %1042 = vmatprep.subr.mxu0 0.0
        %1043 = vmatpush1.xpose.msra.mxu0 0.0
        %1044 = vmatprep.subr.mxu0 0.0
        %1045 = vmatpush1.xpose.msra.mxu0 0.0
        %1046 = vmatprep.subr.mxu0 0.0
        %1047 = vmatpush1.xpose.msra.mxu0 0.0
        %1048 = vmatprep.subr.mxu0 0.0
        %1049 = vmatpush1.xpose.msra.mxu0 0.0
        %1050 = vmatprep.subr.mxu0 0.0
        %1051 = vmatpush1.xpose.msra.mxu0 0.0
        %1052 = vmatprep.subr.mxu0 0.0
        %1053 = vmatpush1.xpose.msra.mxu0 0.0
        %1054 = vmatprep.subr.mxu0 0.0
        %1055 = vmatpush1.xpose.msra.mxu0 0.0
        %1056 = vmatprep.subr.mxu0 0.0
        %1057 = vmatpush1.xpose.msra.mxu0 0.0
        %1058 = vmatprep.subr.mxu0 0.0
        %1059 = vmatpush1.xpose.msra.mxu0 0.0
        %1060 = vmatprep.subr.mxu0 0.0
        %1061 = vmatpush1.xpose.msra.mxu0 0.0
        %1062 = vmatprep.subr.mxu0 0.0
        %1063 = vmatpush1.xpose.msra.mxu0 0.0
        %1064 = vmatprep.subr.mxu0 0.0
        %1065 = vmatpush1.xpose.msra.mxu0 0.0
        %1066 = vmatprep.subr.mxu0 0.0
        %1067 = vmatpush1.xpose.msra.mxu0 0.0
        %1068 = vmatprep.subr.mxu0 0.0
        %1069 = vmatpush1.xpose.msra.mxu0 0.0
        %1070 = vmatprep.subr.mxu0 0.0
        %1071 = vmatpush1.xpose.msra.mxu0 0.0
        %1072 = vmatprep.subr.mxu0 0.0
        %1073 = vmatpush1.xpose.msra.mxu0 0.0
        %1074 = vmatprep.subr.mxu0 0.0
        %1075 = vmatpush1.xpose.msra.mxu0 0.0
        %1076 = vmatprep.subr.mxu0 0.0
        %1077 = vmatpush1.xpose.msra.mxu0 0.0
        %1078 = vmatprep.subr.mxu0 0.0
        %1079 = vmatpush1.xpose.msra.mxu0 0.0
        %1080 = vmatprep.subr.mxu0 0.0
        %1081 = vmatpush1.xpose.msra.mxu0 0.0
        %1082 = vmatprep.subr.mxu0 0.0
        %1083 = vmatpush1.xpose.msra.mxu0 0.0
        %1084 = vmatprep.subr.mxu0 0.0
        %1085 = vmatpush1.xpose.msra.mxu0 0.0
        %1086 = vmatprep.subr.mxu0 0.0
        %1087 = vmatpush1.xpose.msra.mxu0 0.0
        %1088 = vmatprep.subr.mxu0 0.0
        %1089 = vmatpush1.xpose.msra.mxu0 0.0
        %1090 = vmatprep.mubr.f32.mxu0 0.0
        %1091 = vmatmul.mubr.f32.gmra.mrb[0].mxu0 %v1012
        %v1092 = vpop.f32.mrb[0].mxu0
        %v1093 = vadd.f32 %v1010, %v1092
        %v1094 = vpop.f32.mrb[0].mxu0
        %1095 = vdwg.mxu0
        %v1096 = vadd.f32 %v671, %v1093
        %v1097 = vld [vmem:[%s7] sm:$0x1]
        %v1098 = vld [vmem:[%s8] sm:$0x1]
        %v1099 = vsel %vm801, %v1096, 0.0
        %1100 = vadd.xlane.f32.xlu0 %v1099
        %v1101 = vpop.xlane.xlu0 %1100
        %v1102 = vrcp.pop 32.0
        %v1103 = vmul.f32 %v1101, %v1102
        %v1104 = vsub.f32 %v1096, %v1103
        %v1105 = vmul.f32 %v1104, %v1104
        %v1106 = vsel %vm801, %v1105, 0.0
        %1107 = vadd.xlane.f32.xlu0 %v1106
        %v1108 = vpop.xlane.xlu0 %1107
        %v1109 = vmul.f32 %v1108, %v1102
        %v1110 = vadd.f32 %v1109, 1e-05
        %v1111 = vrsqrt.pop %v1110
        %v1112 = vmul.f32 %v1104, %v1111
        %v1113 = vmul.f32 %v1112, %v1097
        %v1114 = vadd.f32 %v1113, %v1098
        %v1115 = vld [vmem:[%s9] sm:$0xff]
        %v1116 = vld [vmem:[%s9 + $0x8] sm:$0xff]
        %v1117 = vld [vmem:[%s9 + $0x10] sm:$0xff]
        %v1118 = vld [vmem:[%s9 + $0x18] sm:$0xff]
        %v1119 = vld [vmem:[%s9 + $0x20] sm:$0xff]
        %v1120 = vld [vmem:[%s9 + $0x28] sm:$0xff]
        %v1121 = vld [vmem:[%s9 + $0x30] sm:$0xff]
        %v1122 = vld [vmem:[%s9 + $0x38] sm:$0xff]
        %v1123 = vld [vmem:[%s9 + $0x40] sm:$0xff]
        %v1124 = vld [vmem:[%s9 + $0x48] sm:$0xff]
        %v1125 = vld [vmem:[%s9 + $0x50] sm:$0xff]
        %v1126 = vld [vmem:[%s9 + $0x58] sm:$0xff]
        %v1127 = vld [vmem:[%s9 + $0x60] sm:$0xff]
        %v1128 = vld [vmem:[%s9 + $0x68] sm:$0xff]
        %v1129 = vld [vmem:[%s9 + $0x70] sm:$0xff]
        %v1130 = vld [vmem:[%s9 + $0x78] sm:$0xff]
        %v1131 = vld [vmem:[%s10] sm:$0x1]
        %v1133 = vsel %vm541, %v1114, 0
        %v1136 = vsel %vm541, %v1115, 0
        %v1139 = vsel %vm541, %v1116, 0
        %v1142 = vsel %vm541, %v1117, 0
        %v1145 = vsel %vm541, %v1118, 0
        %v1148 = vsel %vm541, %v1119, 0
        %v1151 = vsel %vm541, %v1120, 0
        %v1154 = vsel %vm541, %v1121, 0
        %v1157 = vsel %vm541, %v1122, 0
        %v1160 = vsel %vm541, %v1123, 0
        %v1163 = vsel %vm541, %v1124, 0
        %v1166 = vsel %vm541, %v1125, 0
        %v1169 = vsel %vm541, %v1126, 0
        %v1172 = vsel %vm541, %v1127, 0
        %v1175 = vsel %vm541, %v1128, 0
        %v1178 = vsel %vm541, %v1129, 0
        %v1181 = vsel %vm541, %v1130, 0
        %1183 = vmatprep.subr.mxu0 0.0
        %1184 = vmatpush1.xpose.msra.mxu0 %v1136
        %1185 = vmatprep.subr.mxu0 0.0
        %1186 = vmatpush1.xpose.msra.mxu0 %v1139
        %1187 = vmatprep.subr.mxu0 0.0
        %1188 = vmatpush1.xpose.msra.mxu0 %v1142
        %1189 = vmatprep.subr.mxu0 0.0
        %1190 = vmatpush1.xpose.msra.mxu0 %v1145
        %1191 = vmatprep.subr.mxu0 0.0
        %1192 = vmatpush1.xpose.msra.mxu0 %v1148
        %1193 = vmatprep.subr.mxu0 0.0
        %1194 = vmatpush1.xpose.msra.mxu0 %v1151
        %1195 = vmatprep.subr.mxu0 0.0
        %1196 = vmatpush1.xpose.msra.mxu0 %v1154
        %1197 = vmatprep.subr.mxu0 0.0
        %1198 = vmatpush1.xpose.msra.mxu0 %v1157
        %1199 = vmatprep.subr.mxu0 0.0
        %1200 = vmatpush1.xpose.msra.mxu0 %v1160
        %1201 = vmatprep.subr.mxu0 0.0
        %1202 = vmatpush1.xpose.msra.mxu0 %v1163
        %1203 = vmatprep.subr.mxu0 0.0
        %1204 = vmatpush1.xpose.msra.mxu0 %v1166
        %1205 = vmatprep.subr.mxu0 0.0
        %1206 = vmatpush1.xpose.msra.mxu0 %v1169
        %1207 = vmatprep.subr.mxu0 0.0
        %1208 = vmatpush1.xpose.msra.mxu0 %v1172
        %1209 = vmatprep.subr.mxu0 0.0
        %1210 = vmatpush1.xpose.msra.mxu0 %v1175
        %1211 = vmatprep.subr.mxu0 0.0
        %1212 = vmatpush1.xpose.msra.mxu0 %v1178
        %1213 = vmatprep.subr.mxu0 0.0
        %1214 = vmatpush1.xpose.msra.mxu0 %v1181
        %1215 = vmatprep.subr.mxu0 0.0
        %1216 = vmatpush1.xpose.msra.mxu0 0.0
        %1217 = vmatprep.subr.mxu0 0.0
        %1218 = vmatpush1.xpose.msra.mxu0 0.0
        %1219 = vmatprep.subr.mxu0 0.0
        %1220 = vmatpush1.xpose.msra.mxu0 0.0
        %1221 = vmatprep.subr.mxu0 0.0
        %1222 = vmatpush1.xpose.msra.mxu0 0.0
        %1223 = vmatprep.subr.mxu0 0.0
        %1224 = vmatpush1.xpose.msra.mxu0 0.0
        %1225 = vmatprep.subr.mxu0 0.0
        %1226 = vmatpush1.xpose.msra.mxu0 0.0
        %1227 = vmatprep.subr.mxu0 0.0
        %1228 = vmatpush1.xpose.msra.mxu0 0.0
        %1229 = vmatprep.subr.mxu0 0.0
        %1230 = vmatpush1.xpose.msra.mxu0 0.0
        %1231 = vmatprep.subr.mxu0 0.0
        %1232 = vmatpush1.xpose.msra.mxu0 0.0
        %1233 = vmatprep.subr.mxu0 0.0
        %1234 = vmatpush1.xpose.msra.mxu0 0.0
        %1235 = vmatprep.subr.mxu0 0.0
        %1236 = vmatpush1.xpose.msra.mxu0 0.0
        %1237 = vmatprep.subr.mxu0 0.0
        %1238 = vmatpush1.xpose.msra.mxu0 0.0
        %1239 = vmatprep.subr.mxu0 0.0
        %1240 = vmatpush1.xpose.msra.mxu0 0.0
        %1241 = vmatprep.subr.mxu0 0.0
        %1242 = vmatpush1.xpose.msra.mxu0 0.0
        %1243 = vmatprep.subr.mxu0 0.0
        %1244 = vmatpush1.xpose.msra.mxu0 0.0
        %1245 = vmatprep.subr.mxu0 0.0
        %1246 = vmatpush1.xpose.msra.mxu0 0.0
        %1247 = vmatprep.mubr.f32.mxu0 0.0
        %1248 = vmatmul.mubr.f32.gmra.mrb[0].mxu0 %v1133
        %v1249 = vpop.f32.mrb[0].mxu0
        %v1250 = vadd.f32 %v1131, %v1249
        %v1251 = vpop.f32.mrb[0].mxu0
        %1252 = vdwg.mxu0
        %v1253 = vmax.f32 %v1250, 0.0
        %v1254 = vld [vmem:[%s11] sm:$0xff]
        %v1255 = vld [vmem:[%s11 + $0x8] sm:$0xff]
        %v1256 = vld [vmem:[%s11 + $0x10] sm:$0xff]
        %v1257 = vld [vmem:[%s11 + $0x18] sm:$0xff]
        %v1258 = vld [vmem:[%s12] sm:$0x1]
        %1259 = vmatprep.subr.mxu0 0.0
        %1260 = vmatpush1.xpose.msra.mxu0 %v1254
        %1261 = vmatprep.subr.mxu0 0.0
        %1262 = vmatpush1.xpose.msra.mxu0 %v1255
        %1263 = vmatprep.subr.mxu0 0.0
        %1264 = vmatpush1.xpose.msra.mxu0 %v1256
        %1265 = vmatprep.subr.mxu0 0.0
        %1266 = vmatpush1.xpose.msra.mxu0 %v1257
        %1267 = vmatprep.subr.mxu0 0.0
        %1268 = vmatpush1.xpose.msra.mxu0 0.0
        %1269 = vmatprep.subr.mxu0 0.0
        %1270 = vmatpush1.xpose.msra.mxu0 0.0
        %1271 = vmatprep.subr.mxu0 0.0
        %1272 = vmatpush1.xpose.msra.mxu0 0.0
        %1273 = vmatprep.subr.mxu0 0.0
        %1274 = vmatpush1.xpose.msra.mxu0 0.0
        %1275 = vmatprep.subr.mxu0 0.0
        %1276 = vmatpush1.xpose.msra.mxu0 0.0
        %1277 = vmatprep.subr.mxu0 0.0
        %1278 = vmatpush1.xpose.msra.mxu0 0.0
        %1279 = vmatprep.subr.mxu0 0.0
        %1280 = vmatpush1.xpose.msra.mxu0 0.0
        %1281 = vmatprep.subr.mxu0 0.0
        %1282 = vmatpush1.xpose.msra.mxu0 0.0
        %1283 = vmatprep.subr.mxu0 0.0
        %1284 = vmatpush1.xpose.msra.mxu0 0.0
        %1285 = vmatprep.subr.mxu0 0.0
        %1286 = vmatpush1.xpose.msra.mxu0 0.0
        %1287 = vmatprep.subr.mxu0 0.0
        %1288 = vmatpush1.xpose.msra.mxu0 0.0
        %1289 = vmatprep.subr.mxu0 0.0
        %1290 = vmatpush1.xpose.msra.mxu0 0.0
        %1291 = vmatprep.subr.mxu0 0.0
        %1292 = vmatpush1.xpose.msra.mxu0 0.0
        %1293 = vmatprep.subr.mxu0 0.0
        %1294 = vmatpush1.xpose.msra.mxu0 0.0
        %1295 = vmatprep.subr.mxu0 0.0
        %1296 = vmatpush1.xpose.msra.mxu0 0.0
        %1297 = vmatprep.subr.mxu0 0.0
        %1298 = vmatpush1.xpose.msra.mxu0 0.0
        %1299 = vmatprep.subr.mxu0 0.0
        %1300 = vmatpush1.xpose.msra.mxu0 0.0
        %1301 = vmatprep.subr.mxu0 0.0
        %1302 = vmatpush1.xpose.msra.mxu0 0.0
        %1303 = vmatprep.subr.mxu0 0.0
        %1304 = vmatpush1.xpose.msra.mxu0 0.0
        %1305 = vmatprep.subr.mxu0 0.0
        %1306 = vmatpush1.xpose.msra.mxu0 0.0
        %1307 = vmatprep.subr.mxu0 0.0
        %1308 = vmatpush1.xpose.msra.mxu0 0.0
        %1309 = vmatprep.subr.mxu0 0.0
        %1310 = vmatpush1.xpose.msra.mxu0 0.0
        %1311 = vmatprep.subr.mxu0 0.0
        %1312 = vmatpush1.xpose.msra.mxu0 0.0
        %1313 = vmatprep.subr.mxu0 0.0
        %1314 = vmatpush1.xpose.msra.mxu0 0.0
        %1315 = vmatprep.subr.mxu0 0.0
        %1316 = vmatpush1.xpose.msra.mxu0 0.0
        %1317 = vmatprep.subr.mxu0 0.0
        %1318 = vmatpush1.xpose.msra.mxu0 0.0
        %1319 = vmatprep.subr.mxu0 0.0
        %1320 = vmatpush1.xpose.msra.mxu0 0.0
        %1321 = vmatprep.subr.mxu0 0.0
        %1322 = vmatpush1.xpose.msra.mxu0 0.0
        %1323 = vmatprep.mubr.f32.mxu0 0.0
        %1324 = vmatmul.mubr.f32.gmra.mrb[0].mxu0 %v1253
        %v1325 = vpop.f32.mrb[0].mxu0
        %v1326 = vadd.f32 %v1258, %v1325
        %v1327 = vpop.f32.mrb[0].mxu0
        %1328 = vdwg.mxu0
        %v1329 = vadd.f32 %v1114, %v1326
        %v1330 = vld [vmem:[%s13] sm:$0x1]
        %v1331 = vld [vmem:[%s14] sm:$0x1]
        %v1332 = vsel %vm801, %v1329, 0.0
        %1333 = vadd.xlane.f32.xlu0 %v1332
        %v1334 = vpop.xlane.xlu0 %1333
        %v1335 = vmul.f32 %v1334, %v1102
        %v1336 = vsub.f32 %v1329, %v1335
        %v1337 = vmul.f32 %v1336, %v1336
        %v1338 = vsel %vm801, %v1337, 0.0
        %1339 = vadd.xlane.f32.xlu0 %v1338
        %v1340 = vpop.xlane.xlu0 %1339
        %v1341 = vmul.f32 %v1340, %v1102
        %v1342 = vadd.f32 %v1341, 1e-05
        %v1343 = vrsqrt.pop %v1342
        %v1344 = vmul.f32 %v1336, %v1343
        %v1345 = vmul.f32 %v1344, %v1330
        %v1346 = vadd.f32 %v1345, %v1331
        %s1347 = scalar_lea.vmem %s3, 96
        %v1348 = vld [vmem:[%s1347] sm:$0xff]
        %v1349 = vld [vmem:[%s1347 + $0x8] sm:$0xff]
        %v1350 = vld [vmem:[%s1347 + $0x10] sm:$0xff]
        %v1351 = vld [vmem:[%s1347 + $0x18] sm:$0xff]
        %v1352 = vld [vmem:[%s1347 + $0x20] sm:$0xff]
        %v1353 = vld [vmem:[%s1347 + $0x28] sm:$0xff]
        %v1354 = vld [vmem:[%s1347 + $0x30] sm:$0xff]
        %v1355 = vld [vmem:[%s1347 + $0x38] sm:$0xff]
        %v1356 = vld [vmem:[%s1347 + $0x40] sm:$0xff]
        %v1357 = vld [vmem:[%s1347 + $0x48] sm:$0xff]
        %v1358 = vld [vmem:[%s1347 + $0x50] sm:$0xff]
        %v1359 = vld [vmem:[%s1347 + $0x58] sm:$0xff]
        %s1360 = scalar_lea.vmem %s4, 1
        %v1361 = vld [vmem:[%s1360] sm:$0x1]
        %v1363 = vsel %vm541, %v1346, 0
        %v1366 = vsel %vm541, %v1348, 0
        %v1369 = vsel %vm541, %v1349, 0
        %v1372 = vsel %vm541, %v1350, 0
        %v1375 = vsel %vm541, %v1351, 0
        %v1378 = vsel %vm541, %v1352, 0
        %v1381 = vsel %vm541, %v1353, 0
        %v1384 = vsel %vm541, %v1354, 0
        %v1387 = vsel %vm541, %v1355, 0
        %v1390 = vsel %vm541, %v1356, 0
        %v1393 = vsel %vm541, %v1357, 0
        %v1396 = vsel %vm541, %v1358, 0
        %v1399 = vsel %vm541, %v1359, 0
        %1401 = vmatprep.subr.mxu0 0.0
        %1402 = vmatpush1.xpose.msra.mxu0 %v1366
        %1403 = vmatprep.subr.mxu0 0.0
        %1404 = vmatpush1.xpose.msra.mxu0 %v1369
        %1405 = vmatprep.subr.mxu0 0.0
        %1406 = vmatpush1.xpose.msra.mxu0 %v1372
        %1407 = vmatprep.subr.mxu0 0.0
        %1408 = vmatpush1.xpose.msra.mxu0 %v1375
        %1409 = vmatprep.subr.mxu0 0.0
        %1410 = vmatpush1.xpose.msra.mxu0 %v1378
        %1411 = vmatprep.subr.mxu0 0.0
        %1412 = vmatpush1.xpose.msra.mxu0 %v1381
        %1413 = vmatprep.subr.mxu0 0.0
        %1414 = vmatpush1.xpose.msra.mxu0 %v1384
        %1415 = vmatprep.subr.mxu0 0.0
        %1416 = vmatpush1.xpose.msra.mxu0 %v1387
        %1417 = vmatprep.subr.mxu0 0.0
        %1418 = vmatpush1.xpose.msra.mxu0 %v1390
        %1419 = vmatprep.subr.mxu0 0.0
        %1420 = vmatpush1.xpose.msra.mxu0 %v1393
        %1421 = vmatprep.subr.mxu0 0.0
        %1422 = vmatpush1.xpose.msra.mxu0 %v1396
        %1423 = vmatprep.subr.mxu0 0.0
        %1424 = vmatpush1.xpose.msra.mxu0 %v1399
        %1425 = vmatprep.subr.mxu0 0.0
        %1426 = vmatpush1.xpose.msra.mxu0 0.0
        %1427 = vmatprep.subr.mxu0 0.0
        %1428 = vmatpush1.xpose.msra.mxu0 0.0
        %1429 = vmatprep.subr.mxu0 0.0
        %1430 = vmatpush1.xpose.msra.mxu0 0.0
        %1431 = vmatprep.subr.mxu0 0.0
        %1432 = vmatpush1.xpose.msra.mxu0 0.0
        %1433 = vmatprep.subr.mxu0 0.0
        %1434 = vmatpush1.xpose.msra.mxu0 0.0
        %1435 = vmatprep.subr.mxu0 0.0
        %1436 = vmatpush1.xpose.msra.mxu0 0.0
        %1437 = vmatprep.subr.mxu0 0.0
        %1438 = vmatpush1.xpose.msra.mxu0 0.0
        %1439 = vmatprep.subr.mxu0 0.0
        %1440 = vmatpush1.xpose.msra.mxu0 0.0
        %1441 = vmatprep.subr.mxu0 0.0
        %1442 = vmatpush1.xpose.msra.mxu0 0.0
        %1443 = vmatprep.subr.mxu0 0.0
        %1444 = vmatpush1.xpose.msra.mxu0 0.0
        %1445 = vmatprep.subr.mxu0 0.0
        %1446 = vmatpush1.xpose.msra.mxu0 0.0
        %1447 = vmatprep.subr.mxu0 0.0
        %1448 = vmatpush1.xpose.msra.mxu0 0.0
        %1449 = vmatprep.subr.mxu0 0.0
        %1450 = vmatpush1.xpose.msra.mxu0 0.0
        %1451 = vmatprep.subr.mxu0 0.0
        %1452 = vmatpush1.xpose.msra.mxu0 0.0
        %1453 = vmatprep.subr.mxu0 0.0
        %1454 = vmatpush1.xpose.msra.mxu0 0.0
        %1455 = vmatprep.subr.mxu0 0.0
        %1456 = vmatpush1.xpose.msra.mxu0 0.0
        %1457 = vmatprep.subr.mxu0 0.0
        %1458 = vmatpush1.xpose.msra.mxu0 0.0
        %1459 = vmatprep.subr.mxu0 0.0
        %1460 = vmatpush1.xpose.msra.mxu0 0.0
        %1461 = vmatprep.subr.mxu0 0.0
        %1462 = vmatpush1.xpose.msra.mxu0 0.0
        %1463 = vmatprep.subr.mxu0 0.0
        %1464 = vmatpush1.xpose.msra.mxu0 0.0
        %1465 = vmatprep.mubr.f32.mxu0 0.0
        %1466 = vmatmul.mubr.f32.gmra.mrb[0].mxu0 %v1363
        %v1467 = vpop.f32.mrb[0].mxu0
        %v1468 = vadd.f32 %v1361, %v1467
        %v1469 = vpop.f32.mrb[0].mxu0
        %1470 = vdwg.mxu0
        %s1471 = sadd.s32 %s577, 7
        %1473 = vrot.lane.b32.xlu0 %v1468, 96
        %v1474 = vpop.permute.xlu0 %1473
        %s1476 = scalar_lea.vmem [#allocation2], %s1471
        %1477 = vst.msk [vmem:[%s1476] sm:$0x1] %vm801, %v1474
        %1478 = vrot.lane.b32.xlu0 %v1468, 64
        %v1479 = vpop.permute.xlu0 %1478
        %s1481 = scalar_lea.vmem [#allocation3], %s1471
        %1482 = vst.msk [vmem:[%s1481] sm:$0x1] %vm801, %v1479
        %v1483 = vld [vmem:[#allocation2 + $0x7] sm:$0x7f]
        %v1484 = vld [vmem:[#allocation3 + $0x7] sm:$0x7f]
        %v1485 = vlaneseq
        %v1486 = vshrl.u32 %v1485, 7
        %v1487 = vsub.s32 0, %v1486
        %v1488 = vrot.slane %v1468, %v1487
        %v1489 = vmul.f32 %v1488, %v1483
        %v1491 = vsel %vm541, %v1489, 0
        %1493 = vmatprep.subr.mxu0 0.0
        %1494 = vmatpush1.msra.mxu0 %v572
        %1495 = vmatprep.subr.mxu0 0.0
        %1496 = vmatpush1.msra.mxu0 %v573
        %1497 = vmatprep.subr.mxu0 0.0
        %1498 = vmatpush1.msra.mxu0 %v574
        %1499 = vmatprep.subr.mxu0 0.0
        %1500 = vmatpush1.msra.mxu0 %v575
        %1501 = vmatprep.subr.mxu0 0.0
        %1502 = vmatpush1.msra.mxu0 0.0
        %1503 = vmatprep.subr.mxu0 0.0
        %1504 = vmatpush1.msra.mxu0 0.0
        %1505 = vmatprep.subr.mxu0 0.0
        %1506 = vmatpush1.msra.mxu0 0.0
        %1507 = vmatprep.subr.mxu0 0.0
        %1508 = vmatpush1.msra.mxu0 0.0
        %1509 = vmatprep.subr.mxu0 0.0
        %1510 = vmatpush1.msra.mxu0 0.0
        %1511 = vmatprep.subr.mxu0 0.0
        %1512 = vmatpush1.msra.mxu0 0.0
        %1513 = vmatprep.subr.mxu0 0.0
        %1514 = vmatpush1.msra.mxu0 0.0
        %1515 = vmatprep.subr.mxu0 0.0
        %1516 = vmatpush1.msra.mxu0 0.0
        %1517 = vmatprep.subr.mxu0 0.0
        %1518 = vmatpush1.msra.mxu0 0.0
        %1519 = vmatprep.subr.mxu0 0.0
        %1520 = vmatpush1.msra.mxu0 0.0
        %1521 = vmatprep.subr.mxu0 0.0
        %1522 = vmatpush1.msra.mxu0 0.0
        %1523 = vmatprep.subr.mxu0 0.0
        %1524 = vmatpush1.msra.mxu0 0.0
        %1525 = vmatprep.subr.mxu0 0.0
        %1526 = vmatpush1.msra.mxu0 0.0
        %1527 = vmatprep.subr.mxu0 0.0
        %1528 = vmatpush1.msra.mxu0 0.0
        %1529 = vmatprep.subr.mxu0 0.0
        %1530 = vmatpush1.msra.mxu0 0.0
        %1531 = vmatprep.subr.mxu0 0.0
        %1532 = vmatpush1.msra.mxu0 0.0
        %1533 = vmatprep.subr.mxu0 0.0
        %1534 = vmatpush1.msra.mxu0 0.0
        %1535 = vmatprep.subr.mxu0 0.0
        %1536 = vmatpush1.msra.mxu0 0.0
        %1537 = vmatprep.subr.mxu0 0.0
        %1538 = vmatpush1.msra.mxu0 0.0
        %1539 = vmatprep.subr.mxu0 0.0
        %1540 = vmatpush1.msra.mxu0 0.0
        %1541 = vmatprep.subr.mxu0 0.0
        %1542 = vmatpush1.msra.mxu0 0.0
        %1543 = vmatprep.subr.mxu0 0.0
        %1544 = vmatpush1.msra.mxu0 0.0
        %1545 = vmatprep.subr.mxu0 0.0
        %1546 = vmatpush1.msra.mxu0 0.0
        %1547 = vmatprep.subr.mxu0 0.0
        %1548 = vmatpush1.msra.mxu0 0.0
        %1549 = vmatprep.subr.mxu0 0.0
        %1550 = vmatpush1.msra.mxu0 0.0
        %1551 = vmatprep.subr.mxu0 0.0
        %1552 = vmatpush1.msra.mxu0 0.0
        %1553 = vmatprep.subr.mxu0 0.0
        %1554 = vmatpush1.msra.mxu0 0.0
        %1555 = vmatprep.subr.mxu0 0.0
        %1556 = vmatpush1.msra.mxu0 0.0
        %1557 = vmatprep.mubr.f32.mxu0 0.0
        %1558 = vmatmul.mubr.f32.gmra.mrb[0].mxu0 %v1491
        %v1559 = vpop.f32.mrb[0].mxu0
        %v1560 = vadd.f32 0.0, %v1559
        %v1561 = vpop.f32.mrb[0].mxu0
        %1562 = vdwg.mxu0
        %v1563 = vmul.f32 %v1560, 0.35355338
        %v1564 = vsel %vm890, %v1563, -1e+30
        %v1565 = vsel %vm892, %v1564, -inf
        %v1566 = vrot.slane %v1565, 4
        %v1567 = vmax.f32 %v1565, %v1566
        %v1568 = vrot.slane %v1567, 2
        %v1569 = vmax.f32 %v1567, %v1568
        %v1570 = vrot.slane %v1569, 1
        %v1571 = vmax.f32 %v1569, %v1570
        %v1572 = vsub.f32 %v1564, %v1571
        %v1573 = vmul.f32 %v1572, 1.442695
        %v1574 = vpow.pop %v1573
        %v1575 = vsel %vm892, %v1574, 0.0
        %v1576 = vrot.slane %v1575, 4
        %v1577 = vadd.f32 %v1575, %v1576
        %v1578 = vrot.slane %v1577, 2
        %v1579 = vadd.f32 %v1577, %v1578
        %v1580 = vrot.slane %v1579, 1
        %v1581 = vadd.f32 %v1579, %v1580
        %v1582 = vrcp.pop %v1581
        %v1583 = vmul.f32 %v1574, %v1582
        %v1585 = vsel %vm588, %v1583, 0
        %1587 = vmatprep.subr.mxu0 0.0
        %1588 = vmatpush1.xpose.msra.mxu0 %v916
        %1589 = vmatprep.subr.mxu0 0.0
        %1590 = vmatpush1.xpose.msra.mxu0 %v919
        %1591 = vmatprep.subr.mxu0 0.0
        %1592 = vmatpush1.xpose.msra.mxu0 %v922
        %1593 = vmatprep.subr.mxu0 0.0
        %1594 = vmatpush1.xpose.msra.mxu0 %v925
        %1595 = vmatprep.subr.mxu0 0.0
        %1596 = vmatpush1.xpose.msra.mxu0 0.0
        %1597 = vmatprep.subr.mxu0 0.0
        %1598 = vmatpush1.xpose.msra.mxu0 0.0
        %1599 = vmatprep.subr.mxu0 0.0
        %1600 = vmatpush1.xpose.msra.mxu0 0.0
        %1601 = vmatprep.subr.mxu0 0.0
        %1602 = vmatpush1.xpose.msra.mxu0 0.0
        %1603 = vmatprep.subr.mxu0 0.0
        %1604 = vmatpush1.xpose.msra.mxu0 0.0
        %1605 = vmatprep.subr.mxu0 0.0
        %1606 = vmatpush1.xpose.msra.mxu0 0.0
        %1607 = vmatprep.subr.mxu0 0.0
        %1608 = vmatpush1.xpose.msra.mxu0 0.0
        %1609 = vmatprep.subr.mxu0 0.0
        %1610 = vmatpush1.xpose.msra.mxu0 0.0
        %1611 = vmatprep.subr.mxu0 0.0
        %1612 = vmatpush1.xpose.msra.mxu0 0.0
        %1613 = vmatprep.subr.mxu0 0.0
        %1614 = vmatpush1.xpose.msra.mxu0 0.0
        %1615 = vmatprep.subr.mxu0 0.0
        %1616 = vmatpush1.xpose.msra.mxu0 0.0
        %1617 = vmatprep.subr.mxu0 0.0
        %1618 = vmatpush1.xpose.msra.mxu0 0.0
        %1619 = vmatprep.subr.mxu0 0.0
        %1620 = vmatpush1.xpose.msra.mxu0 0.0
        %1621 = vmatprep.subr.mxu0 0.0
        %1622 = vmatpush1.xpose.msra.mxu0 0.0
        %1623 = vmatprep.subr.mxu0 0.0
        %1624 = vmatpush1.xpose.msra.mxu0 0.0
        %1625 = vmatprep.subr.mxu0 0.0
        %1626 = vmatpush1.xpose.msra.mxu0 0.0
        %1627 = vmatprep.subr.mxu0 0.0
        %1628 = vmatpush1.xpose.msra.mxu0 0.0
        %1629 = vmatprep.subr.mxu0 0.0
        %1630 = vmatpush1.xpose.msra.mxu0 0.0
        %1631 = vmatprep.subr.mxu0 0.0
        %1632 = vmatpush1.xpose.msra.mxu0 0.0
        %1633 = vmatprep.subr.mxu0 0.0
        %1634 = vmatpush1.xpose.msra.mxu0 0.0
        %1635 = vmatprep.subr.mxu0 0.0
        %1636 = vmatpush1.xpose.msra.mxu0 0.0
        %1637 = vmatprep.subr.mxu0 0.0
        %1638 = vmatpush1.xpose.msra.mxu0 0.0
        %1639 = vmatprep.subr.mxu0 0.0
        %1640 = vmatpush1.xpose.msra.mxu0 0.0
        %1641 = vmatprep.subr.mxu0 0.0
        %1642 = vmatpush1.xpose.msra.mxu0 0.0
        %1643 = vmatprep.subr.mxu0 0.0
        %1644 = vmatpush1.xpose.msra.mxu0 0.0
        %1645 = vmatprep.subr.mxu0 0.0
        %1646 = vmatpush1.xpose.msra.mxu0 0.0
        %1647 = vmatprep.subr.mxu0 0.0
        %1648 = vmatpush1.xpose.msra.mxu0 0.0
        %1649 = vmatprep.subr.mxu0 0.0
        %1650 = vmatpush1.xpose.msra.mxu0 0.0
        %1651 = vmatprep.mubr.f32.mxu0 0.0
        %1652 = vmatmul.mubr.f32.gmra.mrb[0].mxu0 %v1585
        %v1653 = vpop.f32.mrb[0].mxu0
        %v1654 = vadd.f32 0.0, %v1653
        %v1655 = vpop.f32.mrb[0].mxu0
        %1656 = vdwg.mxu0
        %v1657 = vmul.f32 %v1654, %v1484
        %v1658 = vsel %vm998, %v1657, 0.0
        %v1659 = vrot.slane %v1658, 4
        %v1660 = vadd.f32 %v1658, %v1659
        %v1661 = vrot.slane %v1660, 2
        %v1662 = vadd.f32 %v1660, %v1661
        %v1663 = vrot.slane %v1662, 1
        %v1664 = vadd.f32 %v1662, %v1663
        %s1665 = scalar_lea.vmem %s5, 32
        %v1666 = vld [vmem:[%s1665] sm:$0xff]
        %v1667 = vld [vmem:[%s1665 + $0x8] sm:$0xff]
        %v1668 = vld [vmem:[%s1665 + $0x10] sm:$0xff]
        %v1669 = vld [vmem:[%s1665 + $0x18] sm:$0xff]
        %s1670 = scalar_lea.vmem %s6, 1
        %v1671 = vld [vmem:[%s1670] sm:$0x1]
        %v1673 = vsel %vm541, %v1664, 0
        %v1676 = vsel %vm541, %v1666, 0
        %v1679 = vsel %vm541, %v1667, 0
        %v1682 = vsel %vm541, %v1668, 0
        %v1685 = vsel %vm541, %v1669, 0
        %1687 = vmatprep.subr.mxu0 0.0
        %1688 = vmatpush1.xpose.msra.mxu0 %v1676
        %1689 = vmatprep.subr.mxu0 0.0
        %1690 = vmatpush1.xpose.msra.mxu0 %v1679
        %1691 = vmatprep.subr.mxu0 0.0
        %1692 = vmatpush1.xpose.msra.mxu0 %v1682
        %1693 = vmatprep.subr.mxu0 0.0
        %1694 = vmatpush1.xpose.msra.mxu0 %v1685
        %1695 = vmatprep.subr.mxu0 0.0
        %1696 = vmatpush1.xpose.msra.mxu0 0.0
        %1697 = vmatprep.subr.mxu0 0.0
        %1698 = vmatpush1.xpose.msra.mxu0 0.0
        %1699 = vmatprep.subr.mxu0 0.0
        %1700 = vmatpush1.xpose.msra.mxu0 0.0
        %1701 = vmatprep.subr.mxu0 0.0
        %1702 = vmatpush1.xpose.msra.mxu0 0.0
        %1703 = vmatprep.subr.mxu0 0.0
        %1704 = vmatpush1.xpose.msra.mxu0 0.0
        %1705 = vmatprep.subr.mxu0 0.0
        %1706 = vmatpush1.xpose.msra.mxu0 0.0
        %1707 = vmatprep.subr.mxu0 0.0
        %1708 = vmatpush1.xpose.msra.mxu0 0.0
        %1709 = vmatprep.subr.mxu0 0.0
        %1710 = vmatpush1.xpose.msra.mxu0 0.0
        %1711 = vmatprep.subr.mxu0 0.0
        %1712 = vmatpush1.xpose.msra.mxu0 0.0
        %1713 = vmatprep.subr.mxu0 0.0
        %1714 = vmatpush1.xpose.msra.mxu0 0.0
        %1715 = vmatprep.subr.mxu0 0.0
        %1716 = vmatpush1.xpose.msra.mxu0 0.0
        %1717 = vmatprep.subr.mxu0 0.0
        %1718 = vmatpush1.xpose.msra.mxu0 0.0
        %1719 = vmatprep.subr.mxu0 0.0
        %1720 = vmatpush1.xpose.msra.mxu0 0.0
        %1721 = vmatprep.subr.mxu0 0.0
        %1722 = vmatpush1.xpose.msra.mxu0 0.0
        %1723 = vmatprep.subr.mxu0 0.0
        %1724 = vmatpush1.xpose.msra.mxu0 0.0
        %1725 = vmatprep.subr.mxu0 0.0
        %1726 = vmatpush1.xpose.msra.mxu0 0.0
        %1727 = vmatprep.subr.mxu0 0.0
        %1728 = vmatpush1.xpose.msra.mxu0 0.0
        %1729 = vmatprep.subr.mxu0 0.0
        %1730 = vmatpush1.xpose.msra.mxu0 0.0
        %1731 = vmatprep.subr.mxu0 0.0
        %1732 = vmatpush1.xpose.msra.mxu0 0.0
        %1733 = vmatprep.subr.mxu0 0.0
        %1734 = vmatpush1.xpose.msra.mxu0 0.0
        %1735 = vmatprep.subr.mxu0 0.0
        %1736 = vmatpush1.xpose.msra.mxu0 0.0
        %1737 = vmatprep.subr.mxu0 0.0
        %1738 = vmatpush1.xpose.msra.mxu0 0.0
        %1739 = vmatprep.subr.mxu0 0.0
        %1740 = vmatpush1.xpose.msra.mxu0 0.0
        %1741 = vmatprep.subr.mxu0 0.0
        %1742 = vmatpush1.xpose.msra.mxu0 0.0
        %1743 = vmatprep.subr.mxu0 0.0
        %1744 = vmatpush1.xpose.msra.mxu0 0.0
        %1745 = vmatprep.subr.mxu0 0.0
        %1746 = vmatpush1.xpose.msra.mxu0 0.0
        %1747 = vmatprep.subr.mxu0 0.0
        %1748 = vmatpush1.xpose.msra.mxu0 0.0
        %1749 = vmatprep.subr.mxu0 0.0
        %1750 = vmatpush1.xpose.msra.mxu0 0.0
        %1751 = vmatprep.mubr.f32.mxu0 0.0
        %1752 = vmatmul.mubr.f32.gmra.mrb[0].mxu0 %v1673
        %v1753 = vpop.f32.mrb[0].mxu0
        %v1754 = vadd.f32 %v1671, %v1753
        %v1755 = vpop.f32.mrb[0].mxu0
        %1756 = vdwg.mxu0
        %v1757 = vadd.f32 %v1346, %v1754
        %s1758 = scalar_lea.vmem %s7, 1
        %v1759 = vld [vmem:[%s1758] sm:$0x1]
        %s1760 = scalar_lea.vmem %s8, 1
        %v1761 = vld [vmem:[%s1760] sm:$0x1]
        %v1762 = vsel %vm801, %v1757, 0.0
        %1763 = vadd.xlane.f32.xlu0 %v1762
        %v1764 = vpop.xlane.xlu0 %1763
        %v1765 = vmul.f32 %v1764, %v1102
        %v1766 = vsub.f32 %v1757, %v1765
        %v1767 = vmul.f32 %v1766, %v1766
        %v1768 = vsel %vm801, %v1767, 0.0
        %1769 = vadd.xlane.f32.xlu0 %v1768
        %v1770 = vpop.xlane.xlu0 %1769
        %v1771 = vmul.f32 %v1770, %v1102
        %v1772 = vadd.f32 %v1771, 1e-05
        %v1773 = vrsqrt.pop %v1772
        %v1774 = vmul.f32 %v1766, %v1773
        %v1775 = vmul.f32 %v1774, %v1759
        %v1776 = vadd.f32 %v1775, %v1761
        %s1777 = scalar_lea.vmem %s9, 128
        %v1778 = vld [vmem:[%s1777] sm:$0xff]
        %v1779 = vld [vmem:[%s1777 + $0x8] sm:$0xff]
        %v1780 = vld [vmem:[%s1777 + $0x10] sm:$0xff]
        %v1781 = vld [vmem:[%s1777 + $0x18] sm:$0xff]
        %v1782 = vld [vmem:[%s1777 + $0x20] sm:$0xff]
        %v1783 = vld [vmem:[%s1777 + $0x28] sm:$0xff]
        %v1784 = vld [vmem:[%s1777 + $0x30] sm:$0xff]
        %v1785 = vld [vmem:[%s1777 + $0x38] sm:$0xff]
        %v1786 = vld [vmem:[%s1777 + $0x40] sm:$0xff]
        %v1787 = vld [vmem:[%s1777 + $0x48] sm:$0xff]
        %v1788 = vld [vmem:[%s1777 + $0x50] sm:$0xff]
        %v1789 = vld [vmem:[%s1777 + $0x58] sm:$0xff]
        %v1790 = vld [vmem:[%s1777 + $0x60] sm:$0xff]
        %v1791 = vld [vmem:[%s1777 + $0x68] sm:$0xff]
        %v1792 = vld [vmem:[%s1777 + $0x70] sm:$0xff]
        %v1793 = vld [vmem:[%s1777 + $0x78] sm:$0xff]
        %s1794 = scalar_lea.vmem %s10, 1
        %v1795 = vld [vmem:[%s1794] sm:$0x1]
        %v1797 = vsel %vm541, %v1776, 0
        %v1800 = vsel %vm541, %v1778, 0
        %v1803 = vsel %vm541, %v1779, 0
        %v1806 = vsel %vm541, %v1780, 0
        %v1809 = vsel %vm541, %v1781, 0
        %v1812 = vsel %vm541, %v1782, 0
        %v1815 = vsel %vm541, %v1783, 0
        %v1818 = vsel %vm541, %v1784, 0
        %v1821 = vsel %vm541, %v1785, 0
        %v1824 = vsel %vm541, %v1786, 0
        %v1827 = vsel %vm541, %v1787, 0
        %v1830 = vsel %vm541, %v1788, 0
        %v1833 = vsel %vm541, %v1789, 0
        %v1836 = vsel %vm541, %v1790, 0
        %v1839 = vsel %vm541, %v1791, 0
        %v1842 = vsel %vm541, %v1792, 0
        %v1845 = vsel %vm541, %v1793, 0
        %1847 = vmatprep.subr.mxu0 0.0
        %1848 = vmatpush1.xpose.msra.mxu0 %v1800
        %1849 = vmatprep.subr.mxu0 0.0
        %1850 = vmatpush1.xpose.msra.mxu0 %v1803
        %1851 = vmatprep.subr.mxu0 0.0
        %1852 = vmatpush1.xpose.msra.mxu0 %v1806
        %1853 = vmatprep.subr.mxu0 0.0
        %1854 = vmatpush1.xpose.msra.mxu0 %v1809
        %1855 = vmatprep.subr.mxu0 0.0
        %1856 = vmatpush1.xpose.msra.mxu0 %v1812
        %1857 = vmatprep.subr.mxu0 0.0
        %1858 = vmatpush1.xpose.msra.mxu0 %v1815
        %1859 = vmatprep.subr.mxu0 0.0
        %1860 = vmatpush1.xpose.msra.mxu0 %v1818
        %1861 = vmatprep.subr.mxu0 0.0
        %1862 = vmatpush1.xpose.msra.mxu0 %v1821
        %1863 = vmatprep.subr.mxu0 0.0
        %1864 = vmatpush1.xpose.msra.mxu0 %v1824
        %1865 = vmatprep.subr.mxu0 0.0
        %1866 = vmatpush1.xpose.msra.mxu0 %v1827
        %1867 = vmatprep.subr.mxu0 0.0
        %1868 = vmatpush1.xpose.msra.mxu0 %v1830
        %1869 = vmatprep.subr.mxu0 0.0
        %1870 = vmatpush1.xpose.msra.mxu0 %v1833
        %1871 = vmatprep.subr.mxu0 0.0
        %1872 = vmatpush1.xpose.msra.mxu0 %v1836
        %1873 = vmatprep.subr.mxu0 0.0
        %1874 = vmatpush1.xpose.msra.mxu0 %v1839
        %1875 = vmatprep.subr.mxu0 0.0
        %1876 = vmatpush1.xpose.msra.mxu0 %v1842
        %1877 = vmatprep.subr.mxu0 0.0
        %1878 = vmatpush1.xpose.msra.mxu0 %v1845
        %1879 = vmatprep.subr.mxu0 0.0
        %1880 = vmatpush1.xpose.msra.mxu0 0.0
        %1881 = vmatprep.subr.mxu0 0.0
        %1882 = vmatpush1.xpose.msra.mxu0 0.0
        %1883 = vmatprep.subr.mxu0 0.0
        %1884 = vmatpush1.xpose.msra.mxu0 0.0
        %1885 = vmatprep.subr.mxu0 0.0
        %1886 = vmatpush1.xpose.msra.mxu0 0.0
        %1887 = vmatprep.subr.mxu0 0.0
        %1888 = vmatpush1.xpose.msra.mxu0 0.0
        %1889 = vmatprep.subr.mxu0 0.0
        %1890 = vmatpush1.xpose.msra.mxu0 0.0
        %1891 = vmatprep.subr.mxu0 0.0
        %1892 = vmatpush1.xpose.msra.mxu0 0.0
        %1893 = vmatprep.subr.mxu0 0.0
        %1894 = vmatpush1.xpose.msra.mxu0 0.0
        %1895 = vmatprep.subr.mxu0 0.0
        %1896 = vmatpush1.xpose.msra.mxu0 0.0
        %1897 = vmatprep.subr.mxu0 0.0
        %1898 = vmatpush1.xpose.msra.mxu0 0.0
        %1899 = vmatprep.subr.mxu0 0.0
        %1900 = vmatpush1.xpose.msra.mxu0 0.0
        %1901 = vmatprep.subr.mxu0 0.0
        %1902 = vmatpush1.xpose.msra.mxu0 0.0
        %1903 = vmatprep.subr.mxu0 0.0
        %1904 = vmatpush1.xpose.msra.mxu0 0.0
        %1905 = vmatprep.subr.mxu0 0.0
        %1906 = vmatpush1.xpose.msra.mxu0 0.0
        %1907 = vmatprep.subr.mxu0 0.0
        %1908 = vmatpush1.xpose.msra.mxu0 0.0
        %1909 = vmatprep.subr.mxu0 0.0
        %1910 = vmatpush1.xpose.msra.mxu0 0.0
        %1911 = vmatprep.mubr.f32.mxu0 0.0
        %1912 = vmatmul.mubr.f32.gmra.mrb[0].mxu0 %v1797
        %v1913 = vpop.f32.mrb[0].mxu0
        %v1914 = vadd.f32 %v1795, %v1913
        %v1915 = vpop.f32.mrb[0].mxu0
        %1916 = vdwg.mxu0
        %v1917 = vmax.f32 %v1914, 0.0
        %s1918 = scalar_lea.vmem %s11, 32
        %v1919 = vld [vmem:[%s1918] sm:$0xff]
        %v1920 = vld [vmem:[%s1918 + $0x8] sm:$0xff]
        %v1921 = vld [vmem:[%s1918 + $0x10] sm:$0xff]
        %v1922 = vld [vmem:[%s1918 + $0x18] sm:$0xff]
        %s1923 = scalar_lea.vmem %s12, 1
        %v1924 = vld [vmem:[%s1923] sm:$0x1]
        %1925 = vmatprep.subr.mxu0 0.0
        %1926 = vmatpush1.xpose.msra.mxu0 %v1919
        %1927 = vmatprep.subr.mxu0 0.0
        %1928 = vmatpush1.xpose.msra.mxu0 %v1920
        %1929 = vmatprep.subr.mxu0 0.0
        %1930 = vmatpush1.xpose.msra.mxu0 %v1921
        %1931 = vmatprep.subr.mxu0 0.0
        %1932 = vmatpush1.xpose.msra.mxu0 %v1922
        %1933 = vmatprep.subr.mxu0 0.0
        %1934 = vmatpush1.xpose.msra.mxu0 0.0
        %1935 = vmatprep.subr.mxu0 0.0
        %1936 = vmatpush1.xpose.msra.mxu0 0.0
        %1937 = vmatprep.subr.mxu0 0.0
        %1938 = vmatpush1.xpose.msra.mxu0 0.0
        %1939 = vmatprep.subr.mxu0 0.0
        %1940 = vmatpush1.xpose.msra.mxu0 0.0
        %1941 = vmatprep.subr.mxu0 0.0
        %1942 = vmatpush1.xpose.msra.mxu0 0.0
        %1943 = vmatprep.subr.mxu0 0.0
        %1944 = vmatpush1.xpose.msra.mxu0 0.0
        %1945 = vmatprep.subr.mxu0 0.0
        %1946 = vmatpush1.xpose.msra.mxu0 0.0
        %1947 = vmatprep.subr.mxu0 0.0
        %1948 = vmatpush1.xpose.msra.mxu0 0.0
        %1949 = vmatprep.subr.mxu0 0.0
        %1950 = vmatpush1.xpose.msra.mxu0 0.0
        %1951 = vmatprep.subr.mxu0 0.0
        %1952 = vmatpush1.xpose.msra.mxu0 0.0
        %1953 = vmatprep.subr.mxu0 0.0
        %1954 = vmatpush1.xpose.msra.mxu0 0.0
        %1955 = vmatprep.subr.mxu0 0.0
        %1956 = vmatpush1.xpose.msra.mxu0 0.0
        %1957 = vmatprep.subr.mxu0 0.0
        %1958 = vmatpush1.xpose.msra.mxu0 0.0
        %1959 = vmatprep.subr.mxu0 0.0
        %1960 = vmatpush1.xpose.msra.mxu0 0.0
        %1961 = vmatprep.subr.mxu0 0.0
        %1962 = vmatpush1.xpose.msra.mxu0 0.0
        %1963 = vmatprep.subr.mxu0 0.0
        %1964 = vmatpush1.xpose.msra.mxu0 0.0
        %1965 = vmatprep.subr.mxu0 0.0
        %1966 = vmatpush1.xpose.msra.mxu0 0.0
        %1967 = vmatprep.subr.mxu0 0.0
        %1968 = vmatpush1.xpose.msra.mxu0 0.0
        %1969 = vmatprep.subr.mxu0 0.0
        %1970 = vmatpush1.xpose.msra.mxu0 0.0
        %1971 = vmatprep.subr.mxu0 0.0
        %1972 = vmatpush1.xpose.msra.mxu0 0.0
        %1973 = vmatprep.subr.mxu0 0.0
        %1974 = vmatpush1.xpose.msra.mxu0 0.0
        %1975 = vmatprep.subr.mxu0 0.0
        %1976 = vmatpush1.xpose.msra.mxu0 0.0
        %1977 = vmatprep.subr.mxu0 0.0
        %1978 = vmatpush1.xpose.msra.mxu0 0.0
        %1979 = vmatprep.subr.mxu0 0.0
        %1980 = vmatpush1.xpose.msra.mxu0 0.0
        %1981 = vmatprep.subr.mxu0 0.0
        %1982 = vmatpush1.xpose.msra.mxu0 0.0
        %1983 = vmatprep.subr.mxu0 0.0
        %1984 = vmatpush1.xpose.msra.mxu0 0.0
        %1985 = vmatprep.subr.mxu0 0.0
        %1986 = vmatpush1.xpose.msra.mxu0 0.0
        %1987 = vmatprep.subr.mxu0 0.0
        %1988 = vmatpush1.xpose.msra.mxu0 0.0
        %1989 = vmatprep.mubr.f32.mxu0 0.0
        %1990 = vmatmul.mubr.f32.gmra.mrb[0].mxu0 %v1917
        %v1991 = vpop.f32.mrb[0].mxu0
        %v1992 = vadd.f32 %v1924, %v1991
        %v1993 = vpop.f32.mrb[0].mxu0
        %1994 = vdwg.mxu0
        %v1995 = vadd.f32 %v1776, %v1992
        %s1996 = scalar_lea.vmem %s13, 1
        %v1997 = vld [vmem:[%s1996] sm:$0x1]
        %s1998 = scalar_lea.vmem %s14, 1
        %v1999 = vld [vmem:[%s1998] sm:$0x1]
        %v2000 = vsel %vm801, %v1995, 0.0
        %2001 = vadd.xlane.f32.xlu0 %v2000
        %v2002 = vpop.xlane.xlu0 %2001
        %v2003 = vmul.f32 %v2002, %v1102
        %v2004 = vsub.f32 %v1995, %v2003
        %v2005 = vmul.f32 %v2004, %v2004
        %v2006 = vsel %vm801, %v2005, 0.0
        %2007 = vadd.xlane.f32.xlu0 %v2006
        %v2008 = vpop.xlane.xlu0 %2007
        %v2009 = vmul.f32 %v2008, %v1102
        %v2010 = vadd.f32 %v2009, 1e-05
        %v2011 = vrsqrt.pop %v2010
        %v2012 = vmul.f32 %v2004, %v2011
        %v2013 = vmul.f32 %v2012, %v1997
        %v2014 = vadd.f32 %v2013, %v1999
        %v2015 = vld [vmem:[%s15] sm:$0xf]
        %v2016 = vld [vmem:[%s16] sm:$0x1]
        %v2018 = vsel %vm541, %v2014, 0
        %v2021 = vsel %vm541, %v2015, 0
        %2023 = vmatprep.subr.mxu0 0.0
        %2024 = vmatpush1.xpose.msra.mxu0 %v2021
        %2025 = vmatprep.subr.mxu0 0.0
        %2026 = vmatpush1.xpose.msra.mxu0 0.0
        %2027 = vmatprep.subr.mxu0 0.0
        %2028 = vmatpush1.xpose.msra.mxu0 0.0
        %2029 = vmatprep.subr.mxu0 0.0
        %2030 = vmatpush1.xpose.msra.mxu0 0.0
        %2031 = vmatprep.subr.mxu0 0.0
        %2032 = vmatpush1.xpose.msra.mxu0 0.0
        %2033 = vmatprep.subr.mxu0 0.0
        %2034 = vmatpush1.xpose.msra.mxu0 0.0
        %2035 = vmatprep.subr.mxu0 0.0
        %2036 = vmatpush1.xpose.msra.mxu0 0.0
        %2037 = vmatprep.subr.mxu0 0.0
        %2038 = vmatpush1.xpose.msra.mxu0 0.0
        %2039 = vmatprep.subr.mxu0 0.0
        %2040 = vmatpush1.xpose.msra.mxu0 0.0
        %2041 = vmatprep.subr.mxu0 0.0
        %2042 = vmatpush1.xpose.msra.mxu0 0.0
        %2043 = vmatprep.subr.mxu0 0.0
        %2044 = vmatpush1.xpose.msra.mxu0 0.0
        %2045 = vmatprep.subr.mxu0 0.0
        %2046 = vmatpush1.xpose.msra.mxu0 0.0
        %2047 = vmatprep.subr.mxu0 0.0
        %2048 = vmatpush1.xpose.msra.mxu0 0.0
        %2049 = vmatprep.subr.mxu0 0.0
        %2050 = vmatpush1.xpose.msra.mxu0 0.0
        %2051 = vmatprep.subr.mxu0 0.0
        %2052 = vmatpush1.xpose.msra.mxu0 0.0
        %2053 = vmatprep.subr.mxu0 0.0
        %2054 = vmatpush1.xpose.msra.mxu0 0.0
        %2055 = vmatprep.subr.mxu0 0.0
        %2056 = vmatpush1.xpose.msra.mxu0 0.0
        %2057 = vmatprep.subr.mxu0 0.0
        %2058 = vmatpush1.xpose.msra.mxu0 0.0
        %2059 = vmatprep.subr.mxu0 0.0
        %2060 = vmatpush1.xpose.msra.mxu0 0.0
        %2061 = vmatprep.subr.mxu0 0.0
        %2062 = vmatpush1.xpose.msra.mxu0 0.0
        %2063 = vmatprep.subr.mxu0 0.0
        %2064 = vmatpush1.xpose.msra.mxu0 0.0
        %2065 = vmatprep.subr.mxu0 0.0
        %2066 = vmatpush1.xpose.msra.mxu0 0.0
        %2067 = vmatprep.subr.mxu0 0.0
        %2068 = vmatpush1.xpose.msra.mxu0 0.0
        %2069 = vmatprep.subr.mxu0 0.0
        %2070 = vmatpush1.xpose.msra.mxu0 0.0
        %2071 = vmatprep.subr.mxu0 0.0
        %2072 = vmatpush1.xpose.msra.mxu0 0.0
        %2073 = vmatprep.subr.mxu0 0.0
        %2074 = vmatpush1.xpose.msra.mxu0 0.0
        %2075 = vmatprep.subr.mxu0 0.0
        %2076 = vmatpush1.xpose.msra.mxu0 0.0
        %2077 = vmatprep.subr.mxu0 0.0
        %2078 = vmatpush1.xpose.msra.mxu0 0.0
        %2079 = vmatprep.subr.mxu0 0.0
        %2080 = vmatpush1.xpose.msra.mxu0 0.0
        %2081 = vmatprep.subr.mxu0 0.0
        %2082 = vmatpush1.xpose.msra.mxu0 0.0
        %2083 = vmatprep.subr.mxu0 0.0
        %2084 = vmatpush1.xpose.msra.mxu0 0.0
        %2085 = vmatprep.subr.mxu0 0.0
        %2086 = vmatpush1.xpose.msra.mxu0 0.0
        %2087 = vmatprep.mubr.f32.mxu0 0.0
        %2088 = vmatmul.mubr.f32.gmra.mrb[0].mxu0 %v2018
        %v2089 = vpop.f32.mrb[0].mxu0
        %v2090 = vadd.f32 %v2016, %v2089
        %v2091 = vpop.f32.mrb[0].mxu0
        %2092 = vdwg.mxu0
        %s2093 = scalar_lea.vmem %s540, %s577
        %2094 = vst.msk [vmem:[%s2093] sm:$0x1] %vm548, %v2090
        %2095 = vst.msk [vmem:[#allocation4] sm:$0x1] %vm548, %v2090
      $region93: #{time_series_gpt_forward.1} parent=87 // loop_footer
        %s581 = sadd.s32 1, %s577
      $region94: #{time_series_gpt_forward.1} parent=87 // loop_footer_branch
        %576 = sbr.rel target = $region90
      $region95: #{time_series_gpt_forward.1} parent=87 // loop_exit
        _
      %p2096 = scmp.lt.s32.totalorder %s28, 1
      %s2097 = scalar_select %p2096, %s28, 1
      %s2098 = smul.addr %s2097, 8
      %s2099 = scalar_lea.vmem %s17, %s2098
      // Predicated region
      $region96: #{time_series_gpt_forward.1} parent=87 // pred_check
        %p2100 = pneg %p408
      $region97: #{time_series_gpt_forward.1} parent=87 // pred_check_branch
        %2102 = sbr.rel (%p2100) target = $region99
      $region98: #{time_series_gpt_forward.1} parent=87 // pred_region
        _
      $region99: #{time_series_gpt_forward.1} parent=87 // pred_fallthru
        _
    $region88: #{time_series_gpt_forward.1} parent=5 // pred_fallthru
      _
    %p2103 = scmp.le.s32.totalorder 2, %s23
    // Predicated region
    $region100: #{time_series_gpt_forward.1} parent=5 // pred_check
      %p2104 = pneg %p2103
    $region101: #{time_series_gpt_forward.1} parent=5 // pred_check_branch
      %2106 = sbr.rel (%p2104) target = $region103
    $region102: #{time_series_gpt_forward.1} parent=5 // pred_region
      %s2107 = ssub.s32 %s23, 2
      // Predicated region
      $region104: #{time_series_gpt_forward.1} parent=102 // pred_check
        %p2108 = pneg %p414
      $region105: #{time_series_gpt_forward.1} parent=102 // pred_check_branch
        %2110 = sbr.rel (%p2108) target = $region107
      $region106: #{time_series_gpt_forward.1} parent=102 // pred_region
        %p2111 = scmp.lt.s32.totalorder %s29, 1
        %s2112 = scalar_select %p2111, %s29, 1
        %s2113 = smul.addr %s2112, 8
        %s2114 = scalar_lea.vmem %s17, %s2113
      $region107: #{time_series_gpt_forward.1} parent=102 // pred_fallthru
        _
    $region103: #{time_series_gpt_forward.1} parent=5 // pred_fallthru
      _
  $region6: #{time_series_gpt_forward.1} parent=0 // loop_footer
    %s27 = sadd.s32 1, %s23
  $region7: #{time_series_gpt_forward.1} parent=0 // loop_footer_branch
    %22 = sbr.rel target = $region3
  $region8: #{time_series_gpt_forward.1} parent=0 // loop_exit
    _

</llo_original>
